<compile_context>
chip_gen: v7x
topology: tpu7x:2x2x1
jax: 0.10.0
libtpu: 0.0.40
codegen_flags: <defaults>
</compile_context>

<pallas_src>
import functools

import jax
import jax.numpy as jnp
from jax import lax
from jax.experimental import pallas as pl
from jax.experimental.pallas import tpu as pltpu

EPS = 1e-5  # PyTorch LayerNorm default


def _layernorm(x, g, b):
    mu = jnp.mean(x, axis=-1, keepdims=True)
    var = jnp.mean(jnp.square(x - mu), axis=-1, keepdims=True)  # biased, like PyTorch
    return (x - mu) * lax.rsqrt(var + EPS) * g + b


def residual_block_kernel(x_ref, wf_ref, bf_ref, g1_ref, be1_ref,
                          w2_ref, b2_ref, g2_ref, be2_ref, o_ref,
                          *, K, P, L, Cout):
    """One batch element (one sequence) per grid step.

    x_ref  : (L, Cin_pad)        bf16  channels-last input (channel-padded to 128 multiple)
    wf_ref : (K*Cin_pad, 2*Cout) bf16  fused [conv1 | downsample] im2col weights
    bf_ref : (1, 2*Cout)         f32   fused [b1 | bd] bias
    w2_ref : (K*Cout, Cout)      bf16  conv2 im2col weights
    g*/be*/b2 : (1, Cout)        f32
    o_ref  : (L, Cout)           f32
    """
    x32 = x_ref[...].astype(jnp.float32)  # one cast pass; shifts/masks in f32 (v5e-safe)

    # Row position within the sequence (in-block iota; no cross-batch bleed possible since
    # each block is exactly one sequence).
    pos = lax.broadcasted_iota(jnp.int32, (L, 1), 0)

    # Per-tap validity masks == zero padding of width P; computed once, reused by both convs.
    valids = []
    for k in range(K):
        d = k - P
        valids.append(jnp.logical_and(pos + d >= 0, pos + d < L))

    def im2col(z32):
        """(L, C) f32 -> (L, K*C) bf16 conv patches; taps outside [0, L) are zeroed."""
        taps = []
        for k in range(K):
            d = k - P
            if d == 0:
                t = z32                                   # center tap: always valid
            else:
                # out[i] = z[i + d]; rows that wrap around are exactly the invalid ones
                # and get zeroed by the mask below.
                t = pltpu.roll(z32, shift=(-d) % L, axis=0)
                t = jnp.where(valids[k], t, 0.0)
            taps.append(t.astype(jnp.bfloat16))
        return jnp.concatenate(taps, axis=1)              # lane-aligned 128-wide pieces

    # ---- conv1 + 1x1 downsample in ONE MXU pass (bf16 operands, f32 accumulate) ----
    cols1 = im2col(x32)                                   # (L, K*Cin_pad) bf16
    fused = jnp.dot(cols1, wf_ref[...],
                    preferred_element_type=jnp.float32) + bf_ref[...]   # (L, 2*Cout) f32
    acc1 = fused[:, :Cout]
    identity = fused[:, Cout:]

    # ---- LayerNorm 1 (f32) + ReLU ----
    h = jnp.maximum(_layernorm(acc1, g1_ref[...], be1_ref[...]), 0.0)

    # ---- conv2: single im2col matmul ----
    cols2 = im2col(h)                                     # (L, K*Cout) bf16
    acc2 = jnp.dot(cols2, w2_ref[...],
                   preferred_element_type=jnp.float32) + b2_ref[...]

    # ---- LayerNorm 2 (f32) ----
    h2 = _layernorm(acc2, g2_ref[...], be2_ref[...])

    # ---- residual add + ReLU (lane-dense f32 store, Cout = 128) ----
    o_ref[...] = jnp.maximum(h2 + identity, 0.0)


def residual_block(x, params, *, K, P):
    """x: (B, L, Cin) float32 channels-last (NWC view of PyTorch's NCW input).
    Returns (B, L, Cout) float32."""
    B, L, Cin = x.shape
    Cout = params["w1"].shape[2]
    Cin_pad = ((Cin + 127) // 128) * 128                  # lane-align each im2col tap

    # --- input: channel-pad to Cin_pad, cast to bf16 (halves input HBM traffic) ---
    x_p = x if Cin_pad == Cin else jnp.pad(x, ((0, 0), (0, 0), (0, Cin_pad - Cin)))
    x_bf = x_p.astype(jnp.bfloat16)

    # --- fused conv1 + downsample RHS: (K*Cin_pad, 2*Cout) ---
    w1_p = jnp.pad(params["w1"], ((0, 0), (0, Cin_pad - Cin), (0, 0)))
    w1_p = w1_p.reshape(K * Cin_pad, Cout)                        # im2col layout
    wd_p = jnp.pad(params["wd"], ((0, Cin_pad - Cin), (0, 0)))    # (Cin_pad, Cout)
    w_fused = jnp.zeros((K * Cin_pad, 2 * Cout), jnp.float32)
    w_fused = w_fused.at[:, :Cout].set(w1_p)
    # the center tap of the im2col columns is exactly x, so wd there computes the 1x1 conv
    w_fused = w_fused.at[P * Cin_pad:(P + 1) * Cin_pad, Cout:].set(wd_p)
    w_fused = w_fused.astype(jnp.bfloat16)

    b_fused = jnp.concatenate([params["b1"], params["bd"]]).reshape(1, 2 * Cout)
    b_fused = b_fused.astype(jnp.float32)

    w2 = params["w2"].reshape(K * Cout, Cout).astype(jnp.bfloat16)
    vec = lambda v: v.reshape(1, -1).astype(jnp.float32)          # (C,) -> (1, C) f32

    kernel = functools.partial(residual_block_kernel, K=K, P=P, L=L, Cout=Cout)

    # whole-array, grid-invariant blocks for weights/biases (stay resident across steps)
    def full(a):
        nd = a.ndim
        return pl.BlockSpec(a.shape, lambda b, _nd=nd: (0,) * _nd)

    out = pl.pallas_call(
        kernel,
        out_shape=jax.ShapeDtypeStruct((B, L, Cout), jnp.float32),
        grid=(B,),
        in_specs=[
            pl.BlockSpec((None, L, Cin_pad), lambda b: (b, 0, 0)),  # per-sequence x block
            full(w_fused), full(b_fused),
            full(vec(params["g1"])), full(vec(params["be1"])),
            full(w2), full(vec(params["b2"])),
            full(vec(params["g2"])), full(vec(params["be2"])),
        ],
        out_specs=pl.BlockSpec((None, L, Cout), lambda b: (b, 0, 0)),
        compiler_params=pltpu.CompilerParams(dimension_semantics=("parallel",)),
    )(x_bf, w_fused, b_fused,
      vec(params["g1"]), vec(params["be1"]),
      w2, vec(params["b2"]), vec(params["g2"]), vec(params["be2"]))

    return out


def ref_forward(x, params, *, K, P):
    """Pure-JAX reference (lax.conv) in the same NWC layout and bf16 matmul precision."""
    def conv(z, w, b, pad):
        y = lax.conv_general_dilated(
            z.astype(jnp.bfloat16), w.astype(jnp.bfloat16),
            window_strides=(1,), padding=[(pad, pad)],
            dimension_numbers=("NWC", "WIO", "NWC"),
            preferred_element_type=jnp.float32)
        return y + b[None, None, :]

    def ln(z, g, be):
        mu = jnp.mean(z, -1, keepdims=True)
        var = jnp.mean((z - mu) ** 2, -1, keepdims=True)
        return (z - mu) * lax.rsqrt(var + EPS) * g + be

    h = conv(x, params["w1"], params["b1"], P)
    h = jnp.maximum(ln(h, params["g1"], params["be1"]), 0.0)
    h = conv(h, params["w2"], params["b2"], P)
    h = ln(h, params["g2"], params["be2"])
    identity = conv(x, params["wd"][None], params["bd"], 0)   # 1x1 downsample
    return jnp.maximum(h + identity, 0.0)


if __name__ == "__main__":
    # Small shapes consistent with the module (original: B=1, C=128, L=500).
    # Cout=128 keeps the output lane-dense; Cin != Cout so the downsample path is exercised.
    B, Cin, Cout, L = 2, 64, 128, 96
    K, P = 5, 2      # kernel_size=5 (module default); padding=2 keeps lengths equal

    key = jax.random.PRNGKey(0)
    ks = jax.random.split(key, 9)
    s = 0.1
    params = dict(
        w1=jax.random.normal(ks[0], (K, Cin, Cout), jnp.float32) * s,
        b1=jax.random.normal(ks[1], (Cout,), jnp.float32) * s,
        g1=jnp.ones((Cout,), jnp.float32),
        be1=jnp.zeros((Cout,), jnp.float32),
        w2=jax.random.normal(ks[2], (K, Cout, Cout), jnp.float32) * s,
        b2=jax.random.normal(ks[3], (Cout,), jnp.float32) * s,
        g2=1.0 + jax.random.normal(ks[4], (Cout,), jnp.float32) * s,
        be2=jax.random.normal(ks[5], (Cout,), jnp.float32) * s,
        wd=jax.random.normal(ks[6], (Cin, Cout), jnp.float32) * s,   # 1x1 downsample (Cin != Cout)
        bd=jax.random.normal(ks[7], (Cout,), jnp.float32) * s,
    )
    # x is NWC (B, L, Cin); the PyTorch forward sees the equivalent NCW tensor.
    x = jax.random.normal(ks[8], (B, L, Cin), jnp.float32)

    fwd = jax.jit(functools.partial(residual_block, K=K, P=P))
    out = jax.block_until_ready(fwd(x, params))
    assert out.shape == (B, L, Cout)

    ref = ref_forward(x, params, K=K, P=P)
    max_err = float(jnp.max(jnp.abs(out - ref)))
    assert max_err < 5e-3, f"mismatch vs reference: {max_err}"

    print("KERNEL_OK")
</pallas_src>

<mosaic_0001>
module attributes {stable_mosaic.version = 11 : i64} {
  func.func @residual_block_kernel(%arg0: i32, %arg1: memref<1x96x128xbf16, #tpu.memory_space<vmem>>, %arg2: memref<640x256xbf16, #tpu.memory_space<vmem>>, %arg3: memref<1x256xf32, #tpu.memory_space<vmem>>, %arg4: memref<1x128xf32, #tpu.memory_space<vmem>>, %arg5: memref<1x128xf32, #tpu.memory_space<vmem>>, %arg6: memref<640x128xbf16, #tpu.memory_space<vmem>>, %arg7: memref<1x128xf32, #tpu.memory_space<vmem>>, %arg8: memref<1x128xf32, #tpu.memory_space<vmem>>, %arg9: memref<1x128xf32, #tpu.memory_space<vmem>>, %arg10: memref<1x96x128xf32, #tpu.memory_space<vmem>>) attributes {dimension_semantics = [#tpu.dimension_semantics<parallel>], iteration_bounds = array<i64: 2>, scalar_prefetch = 0 : i64, scratch_operands = 0 : i64, tpu.core_type = #tpu.core_type<tc>, window_params = [{transform_indices = @transform_0, window_bounds = array<i64: 1, 96, 128>}, {pipeline_mode = #tpu.pipeline_mode<synchronous>, transform_indices = @transform_1, window_bounds = array<i64: 640, 256>}, {pipeline_mode = #tpu.pipeline_mode<synchronous>, transform_indices = @transform_2, window_bounds = array<i64: 1, 256>}, {pipeline_mode = #tpu.pipeline_mode<synchronous>, transform_indices = @transform_3, window_bounds = array<i64: 1, 128>}, {pipeline_mode = #tpu.pipeline_mode<synchronous>, transform_indices = @transform_4, window_bounds = array<i64: 1, 128>}, {pipeline_mode = #tpu.pipeline_mode<synchronous>, transform_indices = @transform_5, window_bounds = array<i64: 640, 128>}, {pipeline_mode = #tpu.pipeline_mode<synchronous>, transform_indices = @transform_6, window_bounds = array<i64: 1, 128>}, {pipeline_mode = #tpu.pipeline_mode<synchronous>, transform_indices = @transform_7, window_bounds = array<i64: 1, 128>}, {pipeline_mode = #tpu.pipeline_mode<synchronous>, transform_indices = @transform_8, window_bounds = array<i64: 1, 128>}, {transform_indices = @transform_9, window_bounds = array<i64: 1, 96, 128>}]} {
    %c0 = arith.constant 0 : index
    %c0_0 = arith.constant 0 : index
    %c0_1 = arith.constant 0 : index
    %0 = vector.load %arg1[%c0, %c0_0, %c0_1] : memref<1x96x128xbf16, #tpu.memory_space<vmem>>, vector<1x96x128xbf16>
    %1 = vector.shape_cast %0 : vector<1x96x128xbf16> to vector<96x128xbf16>
    %2 = arith.extf %1 : vector<96x128xbf16> to vector<96x128xf32>
    %3 = tpu.iota {dimensions = array<i32: 0>} : vector<96x1xi32>
    %c-2_i32 = arith.constant -2 : i32
    %4 = vector.broadcast %c-2_i32 : i32 to vector<96x1xi32>
    %5 = arith.addi %3, %4 : vector<96x1xi32>
    %c0_i32 = arith.constant 0 : i32
    %6 = vector.broadcast %c0_i32 : i32 to vector<96x1xi32>
    %7 = arith.cmpi sge, %5, %6 : vector<96x1xi32>
    %c-2_i32_2 = arith.constant -2 : i32
    %8 = vector.broadcast %c-2_i32_2 : i32 to vector<96x1xi32>
    %9 = arith.addi %3, %8 : vector<96x1xi32>
    %c96_i32 = arith.constant 96 : i32
    %10 = vector.broadcast %c96_i32 : i32 to vector<96x1xi32>
    %11 = arith.cmpi slt, %9, %10 : vector<96x1xi32>
    %12 = arith.andi %7, %11 : vector<96x1xi1>
    %c-1_i32 = arith.constant -1 : i32
    %13 = vector.broadcast %c-1_i32 : i32 to vector<96x1xi32>
    %14 = arith.addi %3, %13 : vector<96x1xi32>
    %c0_i32_3 = arith.constant 0 : i32
    %15 = vector.broadcast %c0_i32_3 : i32 to vector<96x1xi32>
    %16 = arith.cmpi sge, %14, %15 : vector<96x1xi32>
    %c-1_i32_4 = arith.constant -1 : i32
    %17 = vector.broadcast %c-1_i32_4 : i32 to vector<96x1xi32>
    %18 = arith.addi %3, %17 : vector<96x1xi32>
    %c96_i32_5 = arith.constant 96 : i32
    %19 = vector.broadcast %c96_i32_5 : i32 to vector<96x1xi32>
    %20 = arith.cmpi slt, %18, %19 : vector<96x1xi32>
    %21 = arith.andi %16, %20 : vector<96x1xi1>
    %c1_i32 = arith.constant 1 : i32
    %22 = vector.broadcast %c1_i32 : i32 to vector<96x1xi32>
    %23 = arith.addi %3, %22 : vector<96x1xi32>
    %c0_i32_6 = arith.constant 0 : i32
    %24 = vector.broadcast %c0_i32_6 : i32 to vector<96x1xi32>
    %25 = arith.cmpi sge, %23, %24 : vector<96x1xi32>
    %c1_i32_7 = arith.constant 1 : i32
    %26 = vector.broadcast %c1_i32_7 : i32 to vector<96x1xi32>
    %27 = arith.addi %3, %26 : vector<96x1xi32>
    %c96_i32_8 = arith.constant 96 : i32
    %28 = vector.broadcast %c96_i32_8 : i32 to vector<96x1xi32>
    %29 = arith.cmpi slt, %27, %28 : vector<96x1xi32>
    %30 = arith.andi %25, %29 : vector<96x1xi1>
    %c2_i32 = arith.constant 2 : i32
    %31 = vector.broadcast %c2_i32 : i32 to vector<96x1xi32>
    %32 = arith.addi %3, %31 : vector<96x1xi32>
    %c0_i32_9 = arith.constant 0 : i32
    %33 = vector.broadcast %c0_i32_9 : i32 to vector<96x1xi32>
    %34 = arith.cmpi sge, %32, %33 : vector<96x1xi32>
    %c2_i32_10 = arith.constant 2 : i32
    %35 = vector.broadcast %c2_i32_10 : i32 to vector<96x1xi32>
    %36 = arith.addi %3, %35 : vector<96x1xi32>
    %c96_i32_11 = arith.constant 96 : i32
    %37 = vector.broadcast %c96_i32_11 : i32 to vector<96x1xi32>
    %38 = arith.cmpi slt, %36, %37 : vector<96x1xi32>
    %39 = arith.andi %34, %38 : vector<96x1xi1>
    %c2_i32_12 = arith.constant 2 : i32
    %40 = tpu.dynamic_rotate %2 by %c2_i32_12 dim 0 : vector<96x128xf32>, i32 -> vector<96x128xf32>
    %cst = arith.constant 0.000000e+00 : f32
    %41 = vector.shape_cast %12 : vector<96x1xi1> to vector<96x1xi1>
    %42 = vector.broadcast %41 : vector<96x1xi1> to vector<96x128xi1>
    %43 = vector.broadcast %cst : f32 to vector<96x128xf32>
    %44 = arith.select %42, %40, %43 : vector<96x128xi1>, vector<96x128xf32>
    %45 = arith.truncf %44 : vector<96x128xf32> to vector<96x128xbf16>
    %c1_i32_13 = arith.constant 1 : i32
    %46 = tpu.dynamic_rotate %2 by %c1_i32_13 dim 0 : vector<96x128xf32>, i32 -> vector<96x128xf32>
    %cst_14 = arith.constant 0.000000e+00 : f32
    %47 = vector.shape_cast %21 : vector<96x1xi1> to vector<96x1xi1>
    %48 = vector.broadcast %47 : vector<96x1xi1> to vector<96x128xi1>
    %49 = vector.broadcast %cst_14 : f32 to vector<96x128xf32>
    %50 = arith.select %48, %46, %49 : vector<96x128xi1>, vector<96x128xf32>
    %51 = arith.truncf %50 : vector<96x128xf32> to vector<96x128xbf16>
    %52 = arith.truncf %2 : vector<96x128xf32> to vector<96x128xbf16>
    %c95_i32 = arith.constant 95 : i32
    %53 = tpu.dynamic_rotate %2 by %c95_i32 dim 0 : vector<96x128xf32>, i32 -> vector<96x128xf32>
    %cst_15 = arith.constant 0.000000e+00 : f32
    %54 = vector.shape_cast %30 : vector<96x1xi1> to vector<96x1xi1>
    %55 = vector.broadcast %54 : vector<96x1xi1> to vector<96x128xi1>
    %56 = vector.broadcast %cst_15 : f32 to vector<96x128xf32>
    %57 = arith.select %55, %53, %56 : vector<96x128xi1>, vector<96x128xf32>
    %58 = arith.truncf %57 : vector<96x128xf32> to vector<96x128xbf16>
    %c94_i32 = arith.constant 94 : i32
    %59 = tpu.dynamic_rotate %2 by %c94_i32 dim 0 : vector<96x128xf32>, i32 -> vector<96x128xf32>
    %cst_16 = arith.constant 0.000000e+00 : f32
    %60 = vector.shape_cast %39 : vector<96x1xi1> to vector<96x1xi1>
    %61 = vector.broadcast %60 : vector<96x1xi1> to vector<96x128xi1>
    %62 = vector.broadcast %cst_16 : f32 to vector<96x128xf32>
    %63 = arith.select %61, %59, %62 : vector<96x128xi1>, vector<96x128xf32>
    %64 = arith.truncf %63 : vector<96x128xf32> to vector<96x128xbf16>
    %65 = tpu.concatenate %45, %51, %52, %58, %64 in 1 : vector<96x128xbf16>, vector<96x128xbf16>, vector<96x128xbf16>, vector<96x128xbf16>, vector<96x128xbf16> -> vector<96x640xbf16>
    %c0_17 = arith.constant 0 : index
    %c0_18 = arith.constant 0 : index
    %66 = vector.load %arg2[%c0_17, %c0_18] : memref<640x256xbf16, #tpu.memory_space<vmem>>, vector<640x256xbf16>
    %cst_19 = arith.constant dense<0.000000e+00> : vector<96x256xf32>
    %67 = tpu.matmul %65, %66, %cst_19 {dimension_numbers = #tpu.dot_dimension_numbers<[1], [0], [0], [1], [0, 0, 1, 1], [], []>} : vector<96x640xbf16>, vector<640x256xbf16>, vector<96x256xf32> -> vector<96x256xf32>
    %c0_20 = arith.constant 0 : index
    %c0_21 = arith.constant 0 : index
    %68 = vector.load %arg3[%c0_20, %c0_21] : memref<1x256xf32, #tpu.memory_space<vmem>>, vector<1x256xf32>
    %69 = vector.broadcast %68 : vector<1x256xf32> to vector<96x256xf32>
    %70 = arith.addf %67, %69 : vector<96x256xf32>
    %71 = vector.extract_strided_slice %70 {offsets = [0, 0], sizes = [96, 128], strides = [1, 1]} : vector<96x256xf32> to vector<96x128xf32>
    %72 = vector.extract_strided_slice %70 {offsets = [0, 128], sizes = [96, 128], strides = [1, 1]} : vector<96x256xf32> to vector<96x128xf32>
    %c0_22 = arith.constant 0 : index
    %c0_23 = arith.constant 0 : index
    %73 = vector.load %arg4[%c0_22, %c0_23] : memref<1x128xf32, #tpu.memory_space<vmem>>, vector<1x128xf32>
    %c0_24 = arith.constant 0 : index
    %c0_25 = arith.constant 0 : index
    %74 = vector.load %arg5[%c0_24, %c0_25] : memref<1x128xf32, #tpu.memory_space<vmem>>, vector<1x128xf32>
    %cst_26 = arith.constant dense<0.000000e+00> : vector<96xf32>
    %75 = vector.multi_reduction <add>, %71, %cst_26 [1] : vector<96x128xf32> to vector<96xf32>
    %76 = vector.shape_cast %75 : vector<96xf32> to vector<96x1xf32>
    %cst_27 = arith.constant 1.280000e+02 : f32
    %77 = vector.broadcast %cst_27 : f32 to vector<96x1xf32>
    %78 = arith.divf %76, %77 : vector<96x1xf32>
    %79 = vector.broadcast %78 : vector<96x1xf32> to vector<96x128xf32>
    %80 = arith.subf %71, %79 : vector<96x128xf32>
    %81 = arith.mulf %80, %80 : vector<96x128xf32>
    %cst_28 = arith.constant dense<0.000000e+00> : vector<96xf32>
    %82 = vector.multi_reduction <add>, %81, %cst_28 [1] : vector<96x128xf32> to vector<96xf32>
    %83 = vector.shape_cast %82 : vector<96xf32> to vector<96x1xf32>
    %cst_29 = arith.constant 1.280000e+02 : f32
    %84 = vector.broadcast %cst_29 : f32 to vector<96x1xf32>
    %85 = arith.divf %83, %84 : vector<96x1xf32>
    %86 = vector.broadcast %78 : vector<96x1xf32> to vector<96x128xf32>
    %87 = arith.subf %71, %86 : vector<96x128xf32>
    %cst_30 = arith.constant 9.99999974E-6 : f32
    %88 = vector.broadcast %cst_30 : f32 to vector<96x1xf32>
    %89 = arith.addf %85, %88 : vector<96x1xf32>
    %90 = math.rsqrt %89 : vector<96x1xf32>
    %91 = vector.broadcast %90 : vector<96x1xf32> to vector<96x128xf32>
    %92 = arith.mulf %87, %91 : vector<96x128xf32>
    %93 = vector.broadcast %73 : vector<1x128xf32> to vector<96x128xf32>
    %94 = arith.mulf %92, %93 : vector<96x128xf32>
    %95 = vector.broadcast %74 : vector<1x128xf32> to vector<96x128xf32>
    %96 = arith.addf %94, %95 : vector<96x128xf32>
    %cst_31 = arith.constant 0.000000e+00 : f32
    %97 = vector.broadcast %cst_31 : f32 to vector<96x128xf32>
    %98 = arith.maximumf %96, %97 : vector<96x128xf32>
    %c2_i32_32 = arith.constant 2 : i32
    %99 = tpu.dynamic_rotate %98 by %c2_i32_32 dim 0 : vector<96x128xf32>, i32 -> vector<96x128xf32>
    %cst_33 = arith.constant 0.000000e+00 : f32
    %100 = vector.shape_cast %12 : vector<96x1xi1> to vector<96x1xi1>
    %101 = vector.broadcast %100 : vector<96x1xi1> to vector<96x128xi1>
    %102 = vector.broadcast %cst_33 : f32 to vector<96x128xf32>
    %103 = arith.select %101, %99, %102 : vector<96x128xi1>, vector<96x128xf32>
    %104 = arith.truncf %103 : vector<96x128xf32> to vector<96x128xbf16>
    %c1_i32_34 = arith.constant 1 : i32
    %105 = tpu.dynamic_rotate %98 by %c1_i32_34 dim 0 : vector<96x128xf32>, i32 -> vector<96x128xf32>
    %cst_35 = arith.constant 0.000000e+00 : f32
    %106 = vector.shape_cast %21 : vector<96x1xi1> to vector<96x1xi1>
    %107 = vector.broadcast %106 : vector<96x1xi1> to vector<96x128xi1>
    %108 = vector.broadcast %cst_35 : f32 to vector<96x128xf32>
    %109 = arith.select %107, %105, %108 : vector<96x128xi1>, vector<96x128xf32>
    %110 = arith.truncf %109 : vector<96x128xf32> to vector<96x128xbf16>
    %111 = arith.truncf %98 : vector<96x128xf32> to vector<96x128xbf16>
    %c95_i32_36 = arith.constant 95 : i32
    %112 = tpu.dynamic_rotate %98 by %c95_i32_36 dim 0 : vector<96x128xf32>, i32 -> vector<96x128xf32>
    %cst_37 = arith.constant 0.000000e+00 : f32
    %113 = vector.shape_cast %30 : vector<96x1xi1> to vector<96x1xi1>
    %114 = vector.broadcast %113 : vector<96x1xi1> to vector<96x128xi1>
    %115 = vector.broadcast %cst_37 : f32 to vector<96x128xf32>
    %116 = arith.select %114, %112, %115 : vector<96x128xi1>, vector<96x128xf32>
    %117 = arith.truncf %116 : vector<96x128xf32> to vector<96x128xbf16>
    %c94_i32_38 = arith.constant 94 : i32
    %118 = tpu.dynamic_rotate %98 by %c94_i32_38 dim 0 : vector<96x128xf32>, i32 -> vector<96x128xf32>
    %cst_39 = arith.constant 0.000000e+00 : f32
    %119 = vector.shape_cast %39 : vector<96x1xi1> to vector<96x1xi1>
    %120 = vector.broadcast %119 : vector<96x1xi1> to vector<96x128xi1>
    %121 = vector.broadcast %cst_39 : f32 to vector<96x128xf32>
    %122 = arith.select %120, %118, %121 : vector<96x128xi1>, vector<96x128xf32>
    %123 = arith.truncf %122 : vector<96x128xf32> to vector<96x128xbf16>
    %124 = tpu.concatenate %104, %110, %111, %117, %123 in 1 : vector<96x128xbf16>, vector<96x128xbf16>, vector<96x128xbf16>, vector<96x128xbf16>, vector<96x128xbf16> -> vector<96x640xbf16>
    %c0_40 = arith.constant 0 : index
    %c0_41 = arith.constant 0 : index
    %125 = vector.load %arg6[%c0_40, %c0_41] : memref<640x128xbf16, #tpu.memory_space<vmem>>, vector<640x128xbf16>
    %cst_42 = arith.constant dense<0.000000e+00> : vector<96x128xf32>
    %126 = tpu.matmul %124, %125, %cst_42 {dimension_numbers = #tpu.dot_dimension_numbers<[1], [0], [0], [1], [0, 0, 1, 1], [], []>} : vector<96x640xbf16>, vector<640x128xbf16>, vector<96x128xf32> -> vector<96x128xf32>
    %c0_43 = arith.constant 0 : index
    %c0_44 = arith.constant 0 : index
    %127 = vector.load %arg7[%c0_43, %c0_44] : memref<1x128xf32, #tpu.memory_space<vmem>>, vector<1x128xf32>
    %128 = vector.broadcast %127 : vector<1x128xf32> to vector<96x128xf32>
    %129 = arith.addf %126, %128 : vector<96x128xf32>
    %c0_45 = arith.constant 0 : index
    %c0_46 = arith.constant 0 : index
    %130 = vector.load %arg8[%c0_45, %c0_46] : memref<1x128xf32, #tpu.memory_space<vmem>>, vector<1x128xf32>
    %c0_47 = arith.constant 0 : index
    %c0_48 = arith.constant 0 : index
    %131 = vector.load %arg9[%c0_47, %c0_48] : memref<1x128xf32, #tpu.memory_space<vmem>>, vector<1x128xf32>
    %cst_49 = arith.constant dense<0.000000e+00> : vector<96xf32>
    %132 = vector.multi_reduction <add>, %129, %cst_49 [1] : vector<96x128xf32> to vector<96xf32>
    %133 = vector.shape_cast %132 : vector<96xf32> to vector<96x1xf32>
    %cst_50 = arith.constant 1.280000e+02 : f32
    %134 = vector.broadcast %cst_50 : f32 to vector<96x1xf32>
    %135 = arith.divf %133, %134 : vector<96x1xf32>
    %136 = vector.broadcast %135 : vector<96x1xf32> to vector<96x128xf32>
    %137 = arith.subf %129, %136 : vector<96x128xf32>
    %138 = arith.mulf %137, %137 : vector<96x128xf32>
    %cst_51 = arith.constant dense<0.000000e+00> : vector<96xf32>
    %139 = vector.multi_reduction <add>, %138, %cst_51 [1] : vector<96x128xf32> to vector<96xf32>
    %140 = vector.shape_cast %139 : vector<96xf32> to vector<96x1xf32>
    %cst_52 = arith.constant 1.280000e+02 : f32
    %141 = vector.broadcast %cst_52 : f32 to vector<96x1xf32>
    %142 = arith.divf %140, %141 : vector<96x1xf32>
    %143 = vector.broadcast %135 : vector<96x1xf32> to vector<96x128xf32>
    %144 = arith.subf %129, %143 : vector<96x128xf32>
    %cst_53 = arith.constant 9.99999974E-6 : f32
    %145 = vector.broadcast %cst_53 : f32 to vector<96x1xf32>
    %146 = arith.addf %142, %145 : vector<96x1xf32>
    %147 = math.rsqrt %146 : vector<96x1xf32>
    %148 = vector.broadcast %147 : vector<96x1xf32> to vector<96x128xf32>
    %149 = arith.mulf %144, %148 : vector<96x128xf32>
    %150 = vector.broadcast %130 : vector<1x128xf32> to vector<96x128xf32>
    %151 = arith.mulf %149, %150 : vector<96x128xf32>
    %152 = vector.broadcast %131 : vector<1x128xf32> to vector<96x128xf32>
    %153 = arith.addf %151, %152 : vector<96x128xf32>
    %154 = arith.addf %153, %72 : vector<96x128xf32>
    %cst_54 = arith.constant 0.000000e+00 : f32
    %155 = vector.broadcast %cst_54 : f32 to vector<96x128xf32>
    %156 = arith.maximumf %154, %155 : vector<96x128xf32>
    %c0_55 = arith.constant 0 : index
    %c0_56 = arith.constant 0 : index
    %c0_57 = arith.constant 0 : index
    %157 = vector.load %arg10[%c0_55, %c0_56, %c0_57] : memref<1x96x128xf32, #tpu.memory_space<vmem>>, vector<1x96x128xf32>
    %158 = vector.shape_cast %157 : vector<1x96x128xf32> to vector<96x128xf32>
    %159 = vector.shape_cast %156 : vector<96x128xf32> to vector<1x96x128xf32>
    tpu.vector_store %arg10[%c0_55, %c0_56, %c0_57], %159 {strides = array<i32>} : memref<1x96x128xf32, #tpu.memory_space<vmem>>, vector<1x96x128xf32>,
    return
  }
  func.func @transform_0(%arg0: i32) -> (i32, i32, i32) {
    %c0_i32 = arith.constant 0 : i32
    %c0_i32_0 = arith.constant 0 : i32
    %c0_i32_1 = arith.constant 0 : i32
    return %arg0, %c0_i32, %c0_i32_0 : i32, i32, i32
  }
  func.func @transform_1(%arg0: i32) -> (i32, i32) {
    %c0_i32 = arith.constant 0 : i32
    %c0_i32_0 = arith.constant 0 : i32
    %c0_i32_1 = arith.constant 0 : i32
    return %c0_i32, %c0_i32_0 : i32, i32
  }
  func.func @transform_2(%arg0: i32) -> (i32, i32) {
    %c0_i32 = arith.constant 0 : i32
    %c0_i32_0 = arith.constant 0 : i32
    %c0_i32_1 = arith.constant 0 : i32
    return %c0_i32, %c0_i32_0 : i32, i32
  }
  func.func @transform_3(%arg0: i32) -> (i32, i32) {
    %c0_i32 = arith.constant 0 : i32
    %c0_i32_0 = arith.constant 0 : i32
    %c0_i32_1 = arith.constant 0 : i32
    return %c0_i32, %c0_i32_0 : i32, i32
  }
  func.func @transform_4(%arg0: i32) -> (i32, i32) {
    %c0_i32 = arith.constant 0 : i32
    %c0_i32_0 = arith.constant 0 : i32
    %c0_i32_1 = arith.constant 0 : i32
    return %c0_i32, %c0_i32_0 : i32, i32
  }
  func.func @transform_5(%arg0: i32) -> (i32, i32) {
    %c0_i32 = arith.constant 0 : i32
    %c0_i32_0 = arith.constant 0 : i32
    %c0_i32_1 = arith.constant 0 : i32
    return %c0_i32, %c0_i32_0 : i32, i32
  }
  func.func @transform_6(%arg0: i32) -> (i32, i32) {
    %c0_i32 = arith.constant 0 : i32
    %c0_i32_0 = arith.constant 0 : i32
    %c0_i32_1 = arith.constant 0 : i32
    return %c0_i32, %c0_i32_0 : i32, i32
  }
  func.func @transform_7(%arg0: i32) -> (i32, i32) {
    %c0_i32 = arith.constant 0 : i32
    %c0_i32_0 = arith.constant 0 : i32
    %c0_i32_1 = arith.constant 0 : i32
    return %c0_i32, %c0_i32_0 : i32, i32
  }
  func.func @transform_8(%arg0: i32) -> (i32, i32) {
    %c0_i32 = arith.constant 0 : i32
    %c0_i32_0 = arith.constant 0 : i32
    %c0_i32_1 = arith.constant 0 : i32
    return %c0_i32, %c0_i32_0 : i32, i32
  }
  func.func @transform_9(%arg0: i32) -> (i32, i32, i32) {
    %c0_i32 = arith.constant 0 : i32
    %c0_i32_0 = arith.constant 0 : i32
    %c0_i32_1 = arith.constant 0 : i32
    return %arg0, %c0_i32, %c0_i32_0 : i32, i32, i32
  }
}

</mosaic_0001>

<llo_original>
// kernel: residual_block.1
$region0: #{residual_block.1}
  #allocation0 [shape = 'u32[]', space=smem, size = 0x4, offset = 0x4, fixed_abs, tag = 'smem constant byte address 0x4 - core index']
  #allocation1 [shape = 'u32[144,128]{1,0:T(1,128)}', space=vmem, size = 0x12000, scoped, tag = 'internal scratch']
  %s0 = inlined_call_operand.vmem [shape: bf16[2,96,128], index: 0, kind: input, shape index: {}]
  %s1 = inlined_call_operand.vmem [shape: bf16[640,256], index: 1, kind: input, shape index: {}]
  %s2 = inlined_call_operand.vmem [shape: f32[1,256], index: 2, kind: input, shape index: {}]
  %s3 = inlined_call_operand.vmem [shape: f32[1,128], index: 3, kind: input, shape index: {}]
  %s4 = inlined_call_operand.vmem [shape: f32[1,128], index: 4, kind: input, shape index: {}]
  %s5 = inlined_call_operand.vmem [shape: bf16[640,128], index: 5, kind: input, shape index: {}]
  %s6 = inlined_call_operand.vmem [shape: f32[1,128], index: 6, kind: input, shape index: {}]
  %s7 = inlined_call_operand.vmem [shape: f32[1,128], index: 7, kind: input, shape index: {}]
  %s8 = inlined_call_operand.vmem [shape: f32[1,128], index: 8, kind: input, shape index: {}]
  %s9 = inlined_call_operand.hbm [shape: f32[2,96,128], index: 9, kind: output, shape index: {}]
  %s10 = sld [smem:[#allocation0]]
  $region69: #{residual_block.1} parent=0
    _
  %s12 = ssub.s32 1, %s10
  %s13 = scalar_select 0, %s12, %s10
  $region1: #{residual_block.1} parent=0
    #allocation2 [shape = 'u8[98304]{0}', space=vmem, size = 0x18000, scoped, tag = 'output window, operand 0']
    #allocation3 [shape = 's32[2]{0}', space=sflag, size = 0x8, scoped, tag = 'scoped memory for residual_block.1']
    %14 = vsyncpa [#allocation3], 0
    %s15 = scalar_lea.sflag [#allocation3], 1
    %16 = vsyncpa %s15, 0
    loop: start=0, step=1, limit=4
    $region2: #{residual_block.1} parent=1 // loop_pre_header
      _
    $region3: #{residual_block.1} parent=1 // loop_header
      %s18 = sphi 0, %s22
      %p19 = scmp.ge.s32.totalorder %s18, 4
      %s28 = sphi 0, %s30
      %s31 = sphi 0, %s28
      %s32 = sphi 0, %s31
      %s48 = sphi 0, %s32
      %s52 = sphi 0, %s52
      %s54 = sphi 0, %s52
      %s55 = sphi 0, %s54
      %s69 = sphi 0, %s55
      %s73 = sphi 0, %s73
      %s75 = sphi 0, %s73
      %s76 = sphi 0, %s75
      %s90 = sphi 0, %s76
      %s94 = sphi 0, %s94
      %s96 = sphi 0, %s94
      %s97 = sphi 0, %s96
      %s111 = sphi 0, %s97
      %s115 = sphi 0, %s115
      %s117 = sphi 0, %s115
      %s118 = sphi 0, %s117
      %s132 = sphi 0, %s118
      %s136 = sphi 0, %s136
      %s138 = sphi 0, %s136
      %s139 = sphi 0, %s138
      %s153 = sphi 0, %s139
      %s157 = sphi 0, %s157
      %s159 = sphi 0, %s157
      %s160 = sphi 0, %s159
      %s174 = sphi 0, %s160
      %s178 = sphi 0, %s178
      %s180 = sphi 0, %s178
      %s181 = sphi 0, %s180
      %s195 = sphi 0, %s181
      %s199 = sphi 0, %s199
      %s201 = sphi 0, %s199
      %s202 = sphi 0, %s201
      %s216 = sphi 0, %s202
      %s222 = sphi 0, %s224
      %s225 = sphi 0, %s222
      %s226 = sphi 0, %s225
      %s242 = sphi 0, %s226
    $region4: #{residual_block.1} parent=1 // loop_header_branch
      %21 = sbr.rel (%p19) target = $region8
    $region5: #{residual_block.1} parent=1 // loop_body
      %s23 = ssub.s32 %s18, 1
      %s24 = ssub.s32 %s18, 2
      %s25 = sadd.s32 %s18, 1
      %s26 = ssub.s32 %s18, %s25
      %p27 = scmp.eq.s32.totalorder %s26, 0
      %s29 = sadd.s32 %s28, 1
      %s30 = scalar_select %p27, %s28, %s29
      %p33 = pneg %p27
      %p34 = scmp.eq.s32.totalorder %s18, 1
      %p35 = por %p33, %p34
      %p36 = scmp.ne.s32.totalorder %s28, %s31
      %p37 = scmp.eq.s32.totalorder %s18, 0
      %p38 = por %p36, %p37
      %p39 = scmp.ne.s32.totalorder %s28, %s31
      %p40 = scmp.eq.s32.totalorder %s23, 1
      %p41 = por %p39, %p40
      %p42 = scmp.ne.s32.totalorder %s31, %s32
      %p43 = scmp.eq.s32.totalorder %s23, 0
      %p44 = por %p42, %p43
      %p45 = scmp.ne.s32.totalorder %s31, %s32
      %p46 = scmp.eq.s32.totalorder %s24, 1
      %p47 = por %p45, %p46
      %p49 = scmp.ne.s32.totalorder %s32, %s48
      %p50 = scmp.eq.s32.totalorder %s24, 0
      %p51 = por %p49, %p50
      %s53 = sadd.s32 %s52, 1
      %p56 = scmp.eq.s32.totalorder %s18, 1
      %p57 = scmp.ne.s32.totalorder %s52, %s54
      %p58 = scmp.eq.s32.totalorder %s18, 0
      %p59 = por %p57, %p58
      %p60 = scmp.ne.s32.totalorder %s52, %s54
      %p61 = scmp.eq.s32.totalorder %s23, 1
      %p62 = por %p60, %p61
      %p63 = scmp.ne.s32.totalorder %s54, %s55
      %p64 = scmp.eq.s32.totalorder %s23, 0
      %p65 = por %p63, %p64
      %p66 = scmp.ne.s32.totalorder %s54, %s55
      %p67 = scmp.eq.s32.totalorder %s24, 1
      %p68 = por %p66, %p67
      %p70 = scmp.ne.s32.totalorder %s55, %s69
      %p71 = scmp.eq.s32.totalorder %s24, 0
      %p72 = por %p70, %p71
      %s74 = sadd.s32 %s73, 1
      %p77 = scmp.eq.s32.totalorder %s18, 1
      %p78 = scmp.ne.s32.totalorder %s73, %s75
      %p79 = scmp.eq.s32.totalorder %s18, 0
      %p80 = por %p78, %p79
      %p81 = scmp.ne.s32.totalorder %s73, %s75
      %p82 = scmp.eq.s32.totalorder %s23, 1
      %p83 = por %p81, %p82
      %p84 = scmp.ne.s32.totalorder %s75, %s76
      %p85 = scmp.eq.s32.totalorder %s23, 0
      %p86 = por %p84, %p85
      %p87 = scmp.ne.s32.totalorder %s75, %s76
      %p88 = scmp.eq.s32.totalorder %s24, 1
      %p89 = por %p87, %p88
      %p91 = scmp.ne.s32.totalorder %s76, %s90
      %p92 = scmp.eq.s32.totalorder %s24, 0
      %p93 = por %p91, %p92
      %s95 = sadd.s32 %s94, 1
      %p98 = scmp.eq.s32.totalorder %s18, 1
      %p99 = scmp.ne.s32.totalorder %s94, %s96
      %p100 = scmp.eq.s32.totalorder %s18, 0
      %p101 = por %p99, %p100
      %p102 = scmp.ne.s32.totalorder %s94, %s96
      %p103 = scmp.eq.s32.totalorder %s23, 1
      %p104 = por %p102, %p103
      %p105 = scmp.ne.s32.totalorder %s96, %s97
      %p106 = scmp.eq.s32.totalorder %s23, 0
      %p107 = por %p105, %p106
      %p108 = scmp.ne.s32.totalorder %s96, %s97
      %p109 = scmp.eq.s32.totalorder %s24, 1
      %p110 = por %p108, %p109
      %p112 = scmp.ne.s32.totalorder %s97, %s111
      %p113 = scmp.eq.s32.totalorder %s24, 0
      %p114 = por %p112, %p113
      %s116 = sadd.s32 %s115, 1
      %p119 = scmp.eq.s32.totalorder %s18, 1
      %p120 = scmp.ne.s32.totalorder %s115, %s117
      %p121 = scmp.eq.s32.totalorder %s18, 0
      %p122 = por %p120, %p121
      %p123 = scmp.ne.s32.totalorder %s115, %s117
      %p124 = scmp.eq.s32.totalorder %s23, 1
      %p125 = por %p123, %p124
      %p126 = scmp.ne.s32.totalorder %s117, %s118
      %p127 = scmp.eq.s32.totalorder %s23, 0
      %p128 = por %p126, %p127
      %p129 = scmp.ne.s32.totalorder %s117, %s118
      %p130 = scmp.eq.s32.totalorder %s24, 1
      %p131 = por %p129, %p130
      %p133 = scmp.ne.s32.totalorder %s118, %s132
      %p134 = scmp.eq.s32.totalorder %s24, 0
      %p135 = por %p133, %p134
      %s137 = sadd.s32 %s136, 1
      %p140 = scmp.eq.s32.totalorder %s18, 1
      %p141 = scmp.ne.s32.totalorder %s136, %s138
      %p142 = scmp.eq.s32.totalorder %s18, 0
      %p143 = por %p141, %p142
      %p144 = scmp.ne.s32.totalorder %s136, %s138
      %p145 = scmp.eq.s32.totalorder %s23, 1
      %p146 = por %p144, %p145
      %p147 = scmp.ne.s32.totalorder %s138, %s139
      %p148 = scmp.eq.s32.totalorder %s23, 0
      %p149 = por %p147, %p148
      %p150 = scmp.ne.s32.totalorder %s138, %s139
      %p151 = scmp.eq.s32.totalorder %s24, 1
      %p152 = por %p150, %p151
      %p154 = scmp.ne.s32.totalorder %s139, %s153
      %p155 = scmp.eq.s32.totalorder %s24, 0
      %p156 = por %p154, %p155
      %s158 = sadd.s32 %s157, 1
      %p161 = scmp.eq.s32.totalorder %s18, 1
      %p162 = scmp.ne.s32.totalorder %s157, %s159
      %p163 = scmp.eq.s32.totalorder %s18, 0
      %p164 = por %p162, %p163
      %p165 = scmp.ne.s32.totalorder %s157, %s159
      %p166 = scmp.eq.s32.totalorder %s23, 1
      %p167 = por %p165, %p166
      %p168 = scmp.ne.s32.totalorder %s159, %s160
      %p169 = scmp.eq.s32.totalorder %s23, 0
      %p170 = por %p168, %p169
      %p171 = scmp.ne.s32.totalorder %s159, %s160
      %p172 = scmp.eq.s32.totalorder %s24, 1
      %p173 = por %p171, %p172
      %p175 = scmp.ne.s32.totalorder %s160, %s174
      %p176 = scmp.eq.s32.totalorder %s24, 0
      %p177 = por %p175, %p176
      %s179 = sadd.s32 %s178, 1
      %p182 = scmp.eq.s32.totalorder %s18, 1
      %p183 = scmp.ne.s32.totalorder %s178, %s180
      %p184 = scmp.eq.s32.totalorder %s18, 0
      %p185 = por %p183, %p184
      %p186 = scmp.ne.s32.totalorder %s178, %s180
      %p187 = scmp.eq.s32.totalorder %s23, 1
      %p188 = por %p186, %p187
      %p189 = scmp.ne.s32.totalorder %s180, %s181
      %p190 = scmp.eq.s32.totalorder %s23, 0
      %p191 = por %p189, %p190
      %p192 = scmp.ne.s32.totalorder %s180, %s181
      %p193 = scmp.eq.s32.totalorder %s24, 1
      %p194 = por %p192, %p193
      %p196 = scmp.ne.s32.totalorder %s181, %s195
      %p197 = scmp.eq.s32.totalorder %s24, 0
      %p198 = por %p196, %p197
      %s200 = sadd.s32 %s199, 1
      %p203 = scmp.eq.s32.totalorder %s18, 1
      %p204 = scmp.ne.s32.totalorder %s199, %s201
      %p205 = scmp.eq.s32.totalorder %s18, 0
      %p206 = por %p204, %p205
      %p207 = scmp.ne.s32.totalorder %s199, %s201
      %p208 = scmp.eq.s32.totalorder %s23, 1
      %p209 = por %p207, %p208
      %p210 = scmp.ne.s32.totalorder %s201, %s202
      %p211 = scmp.eq.s32.totalorder %s23, 0
      %p212 = por %p210, %p211
      %p213 = scmp.ne.s32.totalorder %s201, %s202
      %p214 = scmp.eq.s32.totalorder %s24, 1
      %p215 = por %p213, %p214
      %p217 = scmp.ne.s32.totalorder %s202, %s216
      %p218 = scmp.eq.s32.totalorder %s24, 0
      %p219 = por %p217, %p218
      %s220 = ssub.s32 %s18, %s25
      %p221 = scmp.eq.s32.totalorder %s220, 0
      %s223 = sadd.s32 %s222, 1
      %s224 = scalar_select %p221, %s222, %s223
      %p227 = pneg %p221
      %p228 = scmp.eq.s32.totalorder %s18, 1
      %p229 = por %p227, %p228
      %p230 = scmp.ne.s32.totalorder %s222, %s225
      %p231 = scmp.eq.s32.totalorder %s18, 0
      %p232 = por %p230, %p231
      %p233 = scmp.ne.s32.totalorder %s222, %s225
      %p234 = scmp.eq.s32.totalorder %s23, 1
      %p235 = por %p233, %p234
      %p236 = scmp.ne.s32.totalorder %s225, %s226
      %p237 = scmp.eq.s32.totalorder %s23, 0
      %p238 = por %p236, %p237
      %p239 = scmp.ne.s32.totalorder %s225, %s226
      %p240 = scmp.eq.s32.totalorder %s24, 1
      %p241 = por %p239, %p240
      %p243 = scmp.ne.s32.totalorder %s226, %s242
      %p244 = scmp.eq.s32.totalorder %s24, 0
      %p245 = por %p243, %p244
      %p246 = scmp.le.s32.totalorder 1, %s18
      %p247 = scmp.lt.s32.totalorder %s18, 3
      %p248 = pnand %p246, %p247
      %p249 = pneg %p248
      // Predicated region
      $region9: #{residual_block.1} parent=5 // pred_check
        _
      $region10: #{residual_block.1} parent=5 // pred_check_branch
        %251 = sbr.rel (%p248) target = $region12
      $region11: #{residual_block.1} parent=5 // pred_region
        %s252 = ssub.s32 %s18, 1
        // Predicated region
        $region13: #{residual_block.1} parent=11 // pred_check
          %p253 = pneg %p65
        $region14: #{residual_block.1} parent=11 // pred_check_branch
          %255 = sbr.rel (%p253) target = $region16
        $region15: #{residual_block.1} parent=11 // pred_region
          _
        $region16: #{residual_block.1} parent=11 // pred_fallthru
          _
        // Predicated region
        $region17: #{residual_block.1} parent=11 // pred_check
          %p256 = pneg %p86
        $region18: #{residual_block.1} parent=11 // pred_check_branch
          %258 = sbr.rel (%p256) target = $region20
        $region19: #{residual_block.1} parent=11 // pred_region
          _
        $region20: #{residual_block.1} parent=11 // pred_fallthru
          _
        // Predicated region
        $region21: #{residual_block.1} parent=11 // pred_check
          %p259 = pneg %p107
        $region22: #{residual_block.1} parent=11 // pred_check_branch
          %261 = sbr.rel (%p259) target = $region24
        $region23: #{residual_block.1} parent=11 // pred_region
          _
        $region24: #{residual_block.1} parent=11 // pred_fallthru
          _
        // Predicated region
        $region25: #{residual_block.1} parent=11 // pred_check
          %p262 = pneg %p128
        $region26: #{residual_block.1} parent=11 // pred_check_branch
          %264 = sbr.rel (%p262) target = $region28
        $region27: #{residual_block.1} parent=11 // pred_region
          _
        $region28: #{residual_block.1} parent=11 // pred_fallthru
          _
        // Predicated region
        $region29: #{residual_block.1} parent=11 // pred_check
          %p265 = pneg %p149
        $region30: #{residual_block.1} parent=11 // pred_check_branch
          %267 = sbr.rel (%p265) target = $region32
        $region31: #{residual_block.1} parent=11 // pred_region
          _
        $region32: #{residual_block.1} parent=11 // pred_fallthru
          _
        // Predicated region
        $region33: #{residual_block.1} parent=11 // pred_check
          %p268 = pneg %p170
        $region34: #{residual_block.1} parent=11 // pred_check_branch
          %270 = sbr.rel (%p268) target = $region36
        $region35: #{residual_block.1} parent=11 // pred_region
          _
        $region36: #{residual_block.1} parent=11 // pred_fallthru
          _
        // Predicated region
        $region37: #{residual_block.1} parent=11 // pred_check
          %p271 = pneg %p191
        $region38: #{residual_block.1} parent=11 // pred_check_branch
          %273 = sbr.rel (%p271) target = $region40
        $region39: #{residual_block.1} parent=11 // pred_region
          _
        $region40: #{residual_block.1} parent=11 // pred_fallthru
          _
        // Predicated region
        $region41: #{residual_block.1} parent=11 // pred_check
          %p274 = pneg %p212
        $region42: #{residual_block.1} parent=11 // pred_check_branch
          %276 = sbr.rel (%p274) target = $region44
        $region43: #{residual_block.1} parent=11 // pred_region
          _
        $region44: #{residual_block.1} parent=11 // pred_fallthru
          _
      $region12: #{residual_block.1} parent=5 // pred_fallthru
        _
      %p277 = scmp.lt.s32.totalorder %s18, 2
      // Predicated region
      $region45: #{residual_block.1} parent=5 // pred_check
        %p278 = pneg %p277
      $region46: #{residual_block.1} parent=5 // pred_check_branch
        %280 = sbr.rel (%p278) target = $region48
      $region47: #{residual_block.1} parent=5 // pred_region
        // Predicated region
        $region49: #{residual_block.1} parent=47 // pred_check
          %p281 = pneg %p38
        $region50: #{residual_block.1} parent=47 // pred_check_branch
          %283 = sbr.rel (%p281) target = $region52
        $region51: #{residual_block.1} parent=47 // pred_region
          %p284 = scmp.lt.s32.totalorder %s18, 1
          %s285 = scalar_select %p284, %s18, 1
          %s286 = smul.addr %s285, 12
          %s287 = smul.addr %s286, 4
          %s288 = scalar_lea.vmem %s0, %s287
        $region52: #{residual_block.1} parent=47 // pred_fallthru
          _
      $region48: #{residual_block.1} parent=5 // pred_fallthru
        _
      %p289 = scmp.le.s32.totalorder 1, %s18
      %p290 = scmp.lt.s32.totalorder %s18, 3
      %p291 = pnand %p289, %p290
      %p292 = pneg %p291
      // Predicated region
      $region53: #{residual_block.1} parent=5 // pred_check
        _
      $region54: #{residual_block.1} parent=5 // pred_check_branch
        %294 = sbr.rel (%p291) target = $region56
      $region55: #{residual_block.1} parent=5 // pred_region
        %s295 = ssub.s32 %s18, 1
        %p296 = scmp.lt.s32.totalorder %s23, 1
        %s297 = scalar_select %p296, %s23, 1
        %s298 = smul.addr %s297, 12
        %s299 = smul.addr %s298, 4
        %s300 = scalar_lea.vmem %s0, %s299
        %p301 = pneg %p44
        %p302 = pneg %p41
        %p303 = pneg %p65
        %p304 = pneg %p62
        %p305 = pneg %p86
        %p306 = pneg %p83
        %p307 = pneg %p107
        %p308 = pneg %p104
        %p309 = pneg %p128
        %p310 = pneg %p125
        %p311 = pneg %p149
        %p312 = pneg %p146
        %p313 = pneg %p170
        %p314 = pneg %p167
        %p315 = pneg %p191
        %p316 = pneg %p188
        %p317 = pneg %p212
        %p318 = pneg %p209
        %p319 = pneg %p238
        %p320 = pneg %p235
        %s321 = sand.u32 %s225, 1
        %s322 = scalar_lea.sflag [#allocation3], %s321
        %s323 = sand.u32 %s225, 1
        %s324 = smul.addr %s323, 96
        %s325 = scalar_lea.vmem [#allocation2], %s324
        %p326 = scmp.lt.s32.totalorder %s23, 1
        %s327 = scalar_select %p326, %s23, 1
        %s328 = smul.addr %s327, 12
        %s329 = smul.addr %s328, 4
        %s330 = scalar_lea.vmem %s0, %s329
        %v332 = vld [vmem:[%s330] sm:$0xf]
        %v333 = vld [vmem:[%s330 + $0x4] sm:$0xf]
        %v334 = vld [vmem:[%s330 + $0x8] sm:$0xf]
        %v335 = vld [vmem:[%s330 + $0xc] sm:$0xf]
        %v336 = vld [vmem:[%s330 + $0x10] sm:$0xf]
        %v337 = vld [vmem:[%s330 + $0x14] sm:$0xf]
        %v338 = vld [vmem:[%s330 + $0x18] sm:$0xf]
        %v339 = vld [vmem:[%s330 + $0x1c] sm:$0xf]
        %v340 = vld [vmem:[%s330 + $0x20] sm:$0xf]
        %v341 = vld [vmem:[%s330 + $0x24] sm:$0xf]
        %v342 = vld [vmem:[%s330 + $0x28] sm:$0xf]
        %v343 = vld [vmem:[%s330 + $0x2c] sm:$0xf]
        %v344 = vunpack.c.l.bf16 %v332
        %v345 = vunpack.c.l.bf16 %v333
        %v346 = vunpack.c.l.bf16 %v334
        %v347 = vunpack.c.l.bf16 %v335
        %v348 = vunpack.c.l.bf16 %v336
        %v349 = vunpack.c.l.bf16 %v337
        %v350 = vunpack.c.l.bf16 %v338
        %v351 = vunpack.c.l.bf16 %v339
        %v352 = vunpack.c.l.bf16 %v340
        %v353 = vunpack.c.l.bf16 %v341
        %v354 = vunpack.c.l.bf16 %v342
        %v355 = vunpack.c.l.bf16 %v343
        %v356 = vlaneseq
        %v357 = vshrl.u32 %v356, 7
        %v358 = vadd.s32 %v357, 8
        %v359 = vadd.s32 %v357, 16
        %v360 = vadd.s32 %v357, 24
        %v361 = vadd.s32 %v357, 32
        %v362 = vadd.s32 %v357, 40
        %v363 = vadd.s32 %v357, 48
        %v364 = vadd.s32 %v357, 56
        %v365 = vadd.s32 %v357, 64
        %v366 = vadd.s32 %v357, 72
        %v367 = vadd.s32 %v357, 80
        %v368 = vadd.s32 %v357, 88
        %v369 = vadd.s32 %v357, 4294967294
        %v370 = vadd.s32 %v358, 4294967294
        %v371 = vadd.s32 %v359, 4294967294
        %v372 = vadd.s32 %v360, 4294967294
        %v373 = vadd.s32 %v361, 4294967294
        %v374 = vadd.s32 %v362, 4294967294
        %v375 = vadd.s32 %v363, 4294967294
        %v376 = vadd.s32 %v364, 4294967294
        %v377 = vadd.s32 %v365, 4294967294
        %v378 = vadd.s32 %v366, 4294967294
        %v379 = vadd.s32 %v367, 4294967294
        %v380 = vadd.s32 %v368, 4294967294
        %vm381 = vcmp.ge.s32.totalorder %v369, 0
        %vm382 = vcmp.ge.s32.totalorder %v370, 0
        %vm383 = vcmp.ge.s32.totalorder %v371, 0
        %vm384 = vcmp.ge.s32.totalorder %v372, 0
        %vm385 = vcmp.ge.s32.totalorder %v373, 0
        %vm386 = vcmp.ge.s32.totalorder %v374, 0
        %vm387 = vcmp.ge.s32.totalorder %v375, 0
        %vm388 = vcmp.ge.s32.totalorder %v376, 0
        %vm389 = vcmp.ge.s32.totalorder %v377, 0
        %vm390 = vcmp.ge.s32.totalorder %v378, 0
        %vm391 = vcmp.ge.s32.totalorder %v379, 0
        %vm392 = vcmp.ge.s32.totalorder %v380, 0
        %vm393 = vcmp.lt.s32.totalorder %v369, 96
        %vm394 = vcmp.lt.s32.totalorder %v370, 96
        %vm395 = vcmp.lt.s32.totalorder %v371, 96
        %vm396 = vcmp.lt.s32.totalorder %v372, 96
        %vm397 = vcmp.lt.s32.totalorder %v373, 96
        %vm398 = vcmp.lt.s32.totalorder %v374, 96
        %vm399 = vcmp.lt.s32.totalorder %v375, 96
        %vm400 = vcmp.lt.s32.totalorder %v376, 96
        %vm401 = vcmp.lt.s32.totalorder %v377, 96
        %vm402 = vcmp.lt.s32.totalorder %v378, 96
        %vm403 = vcmp.lt.s32.totalorder %v379, 96
        %vm404 = vcmp.lt.s32.totalorder %v380, 96
        %vm405 = vmand %vm381, %vm393
        %vm406 = vmand %vm382, %vm394
        %vm407 = vmand %vm383, %vm395
        %vm408 = vmand %vm384, %vm396
        %vm409 = vmand %vm385, %vm397
        %vm410 = vmand %vm386, %vm398
        %vm411 = vmand %vm387, %vm399
        %vm412 = vmand %vm388, %vm400
        %vm413 = vmand %vm389, %vm401
        %vm414 = vmand %vm390, %vm402
        %vm415 = vmand %vm391, %vm403
        %vm416 = vmand %vm392, %vm404
        %v417 = vadd.s32 %v357, 4294967295
        %v418 = vadd.s32 %v358, 4294967295
        %v419 = vadd.s32 %v359, 4294967295
        %v420 = vadd.s32 %v360, 4294967295
        %v421 = vadd.s32 %v361, 4294967295
        %v422 = vadd.s32 %v362, 4294967295
        %v423 = vadd.s32 %v363, 4294967295
        %v424 = vadd.s32 %v364, 4294967295
        %v425 = vadd.s32 %v365, 4294967295
        %v426 = vadd.s32 %v366, 4294967295
        %v427 = vadd.s32 %v367, 4294967295
        %v428 = vadd.s32 %v368, 4294967295
        %vm429 = vcmp.ge.s32.totalorder %v417, 0
        %vm430 = vcmp.ge.s32.totalorder %v418, 0
        %vm431 = vcmp.ge.s32.totalorder %v419, 0
        %vm432 = vcmp.ge.s32.totalorder %v420, 0
        %vm433 = vcmp.ge.s32.totalorder %v421, 0
        %vm434 = vcmp.ge.s32.totalorder %v422, 0
        %vm435 = vcmp.ge.s32.totalorder %v423, 0
        %vm436 = vcmp.ge.s32.totalorder %v424, 0
        %vm437 = vcmp.ge.s32.totalorder %v425, 0
        %vm438 = vcmp.ge.s32.totalorder %v426, 0
        %vm439 = vcmp.ge.s32.totalorder %v427, 0
        %vm440 = vcmp.ge.s32.totalorder %v428, 0
        %vm441 = vcmp.lt.s32.totalorder %v417, 96
        %vm442 = vcmp.lt.s32.totalorder %v418, 96
        %vm443 = vcmp.lt.s32.totalorder %v419, 96
        %vm444 = vcmp.lt.s32.totalorder %v420, 96
        %vm445 = vcmp.lt.s32.totalorder %v421, 96
        %vm446 = vcmp.lt.s32.totalorder %v422, 96
        %vm447 = vcmp.lt.s32.totalorder %v423, 96
        %vm448 = vcmp.lt.s32.totalorder %v424, 96
        %vm449 = vcmp.lt.s32.totalorder %v425, 96
        %vm450 = vcmp.lt.s32.totalorder %v426, 96
        %vm451 = vcmp.lt.s32.totalorder %v427, 96
        %vm452 = vcmp.lt.s32.totalorder %v428, 96
        %vm453 = vmand %vm429, %vm441
        %vm454 = vmand %vm430, %vm442
        %vm455 = vmand %vm431, %vm443
        %vm456 = vmand %vm432, %vm444
        %vm457 = vmand %vm433, %vm445
        %vm458 = vmand %vm434, %vm446
        %vm459 = vmand %vm435, %vm447
        %vm460 = vmand %vm436, %vm448
        %vm461 = vmand %vm437, %vm449
        %vm462 = vmand %vm438, %vm450
        %vm463 = vmand %vm439, %vm451
        %vm464 = vmand %vm440, %vm452
        %v465 = vadd.s32 %v357, 1
        %v466 = vadd.s32 %v358, 1
        %v467 = vadd.s32 %v359, 1
        %v468 = vadd.s32 %v360, 1
        %v469 = vadd.s32 %v361, 1
        %v470 = vadd.s32 %v362, 1
        %v471 = vadd.s32 %v363, 1
        %v472 = vadd.s32 %v364, 1
        %v473 = vadd.s32 %v365, 1
        %v474 = vadd.s32 %v366, 1
        %v475 = vadd.s32 %v367, 1
        %v476 = vadd.s32 %v368, 1
        %vm477 = vcmp.ge.s32.totalorder %v465, 0
        %vm478 = vcmp.ge.s32.totalorder %v466, 0
        %vm479 = vcmp.ge.s32.totalorder %v467, 0
        %vm480 = vcmp.ge.s32.totalorder %v468, 0
        %vm481 = vcmp.ge.s32.totalorder %v469, 0
        %vm482 = vcmp.ge.s32.totalorder %v470, 0
        %vm483 = vcmp.ge.s32.totalorder %v471, 0
        %vm484 = vcmp.ge.s32.totalorder %v472, 0
        %vm485 = vcmp.ge.s32.totalorder %v473, 0
        %vm486 = vcmp.ge.s32.totalorder %v474, 0
        %vm487 = vcmp.ge.s32.totalorder %v475, 0
        %vm488 = vcmp.ge.s32.totalorder %v476, 0
        %vm489 = vcmp.lt.s32.totalorder %v465, 96
        %vm490 = vcmp.lt.s32.totalorder %v466, 96
        %vm491 = vcmp.lt.s32.totalorder %v467, 96
        %vm492 = vcmp.lt.s32.totalorder %v468, 96
        %vm493 = vcmp.lt.s32.totalorder %v469, 96
        %vm494 = vcmp.lt.s32.totalorder %v470, 96
        %vm495 = vcmp.lt.s32.totalorder %v471, 96
        %vm496 = vcmp.lt.s32.totalorder %v472, 96
        %vm497 = vcmp.lt.s32.totalorder %v473, 96
        %vm498 = vcmp.lt.s32.totalorder %v474, 96
        %vm499 = vcmp.lt.s32.totalorder %v475, 96
        %vm500 = vcmp.lt.s32.totalorder %v476, 96
        %vm501 = vmand %vm477, %vm489
        %vm502 = vmand %vm478, %vm490
        %vm503 = vmand %vm479, %vm491
        %vm504 = vmand %vm480, %vm492
        %vm505 = vmand %vm481, %vm493
        %vm506 = vmand %vm482, %vm494
        %vm507 = vmand %vm483, %vm495
        %vm508 = vmand %vm484, %vm496
        %vm509 = vmand %vm485, %vm497
        %vm510 = vmand %vm486, %vm498
        %vm511 = vmand %vm487, %vm499
        %vm512 = vmand %vm488, %vm500
        %v513 = vadd.s32 %v357, 2
        %v514 = vadd.s32 %v358, 2
        %v515 = vadd.s32 %v359, 2
        %v516 = vadd.s32 %v360, 2
        %v517 = vadd.s32 %v361, 2
        %v518 = vadd.s32 %v362, 2
        %v519 = vadd.s32 %v363, 2
        %v520 = vadd.s32 %v364, 2
        %v521 = vadd.s32 %v365, 2
        %v522 = vadd.s32 %v366, 2
        %v523 = vadd.s32 %v367, 2
        %v524 = vadd.s32 %v368, 2
        %vm525 = vcmp.ge.s32.totalorder %v513, 0
        %vm526 = vcmp.ge.s32.totalorder %v514, 0
        %vm527 = vcmp.ge.s32.totalorder %v515, 0
        %vm528 = vcmp.ge.s32.totalorder %v516, 0
        %vm529 = vcmp.ge.s32.totalorder %v517, 0
        %vm530 = vcmp.ge.s32.totalorder %v518, 0
        %vm531 = vcmp.ge.s32.totalorder %v519, 0
        %vm532 = vcmp.ge.s32.totalorder %v520, 0
        %vm533 = vcmp.ge.s32.totalorder %v521, 0
        %vm534 = vcmp.ge.s32.totalorder %v522, 0
        %vm535 = vcmp.ge.s32.totalorder %v523, 0
        %vm536 = vcmp.ge.s32.totalorder %v524, 0
        %vm537 = vcmp.lt.s32.totalorder %v513, 96
        %vm538 = vcmp.lt.s32.totalorder %v514, 96
        %vm539 = vcmp.lt.s32.totalorder %v515, 96
        %vm540 = vcmp.lt.s32.totalorder %v516, 96
        %vm541 = vcmp.lt.s32.totalorder %v517, 96
        %vm542 = vcmp.lt.s32.totalorder %v518, 96
        %vm543 = vcmp.lt.s32.totalorder %v519, 96
        %vm544 = vcmp.lt.s32.totalorder %v520, 96
        %vm545 = vcmp.lt.s32.totalorder %v521, 96
        %vm546 = vcmp.lt.s32.totalorder %v522, 96
        %vm547 = vcmp.lt.s32.totalorder %v523, 96
        %vm548 = vcmp.lt.s32.totalorder %v524, 96
        %vm549 = vmand %vm525, %vm537
        %vm550 = vmand %vm526, %vm538
        %vm551 = vmand %vm527, %vm539
        %vm552 = vmand %vm528, %vm540
        %vm553 = vmand %vm529, %vm541
        %vm554 = vmand %vm530, %vm542
        %vm555 = vmand %vm531, %vm543
        %vm556 = vmand %vm532, %vm544
        %vm557 = vmand %vm533, %vm545
        %vm558 = vmand %vm534, %vm546
        %vm559 = vmand %vm535, %vm547
        %vm560 = vmand %vm536, %vm548
        %v561 = vrot.slane %v344, 6
        %v562 = vrot.slane %v345, 6
        %v563 = vrot.slane %v346, 6
        %v564 = vrot.slane %v347, 6
        %v565 = vrot.slane %v348, 6
        %v566 = vrot.slane %v349, 6
        %v567 = vrot.slane %v350, 6
        %v568 = vrot.slane %v351, 6
        %v569 = vrot.slane %v352, 6
        %v570 = vrot.slane %v353, 6
        %v571 = vrot.slane %v354, 6
        %v572 = vrot.slane %v355, 6
        %vm573 = vcmp.lt.s32.totalorder %v357, 2
        %v574 = vsel %vm573, %v571, %v572
        %v575 = vsel %vm573, %v570, %v571
        %v576 = vsel %vm573, %v569, %v570
        %v577 = vsel %vm573, %v568, %v569
        %v578 = vsel %vm573, %v567, %v568
        %v579 = vsel %vm573, %v566, %v567
        %v580 = vsel %vm573, %v565, %v566
        %v581 = vsel %vm573, %v564, %v565
        %v582 = vsel %vm573, %v563, %v564
        %v583 = vsel %vm573, %v562, %v563
        %v584 = vsel %vm573, %v561, %v562
        %v585 = vsel %vm573, %v572, %v561
        %v586 = vsel %vm405, 1, 0
        %v587 = vsel %vm406, 1, 0
        %v588 = vsel %vm407, 1, 0
        %v589 = vsel %vm408, 1, 0
        %v590 = vsel %vm409, 1, 0
        %v591 = vsel %vm410, 1, 0
        %v592 = vsel %vm411, 1, 0
        %v593 = vsel %vm412, 1, 0
        %v594 = vsel %vm413, 1, 0
        %v595 = vsel %vm414, 1, 0
        %v596 = vsel %vm415, 1, 0
        %v597 = vsel %vm416, 1, 0
        %vm598 = vcmp.eq.s32.totalorder %v586, 1
        %vm599 = vcmp.eq.s32.totalorder %v587, 1
        %vm600 = vcmp.eq.s32.totalorder %v588, 1
        %vm601 = vcmp.eq.s32.totalorder %v589, 1
        %vm602 = vcmp.eq.s32.totalorder %v590, 1
        %vm603 = vcmp.eq.s32.totalorder %v591, 1
        %vm604 = vcmp.eq.s32.totalorder %v592, 1
        %vm605 = vcmp.eq.s32.totalorder %v593, 1
        %vm606 = vcmp.eq.s32.totalorder %v594, 1
        %vm607 = vcmp.eq.s32.totalorder %v595, 1
        %vm608 = vcmp.eq.s32.totalorder %v596, 1
        %vm609 = vcmp.eq.s32.totalorder %v597, 1
        %v610 = vsel %vm598, %v585, 0.0
        %v611 = vsel %vm599, %v584, 0.0
        %v612 = vsel %vm600, %v583, 0.0
        %v613 = vsel %vm601, %v582, 0.0
        %v614 = vsel %vm602, %v581, 0.0
        %v615 = vsel %vm603, %v580, 0.0
        %v616 = vsel %vm604, %v579, 0.0
        %v617 = vsel %vm605, %v578, 0.0
        %v618 = vsel %vm606, %v577, 0.0
        %v619 = vsel %vm607, %v576, 0.0
        %v620 = vsel %vm608, %v575, 0.0
        %v621 = vsel %vm609, %v574, 0.0
        %v622 = vpack.c.bf16 %v611, %v610
        %v623 = vpack.c.bf16 %v613, %v612
        %v624 = vpack.c.bf16 %v615, %v614
        %v625 = vpack.c.bf16 %v617, %v616
        %v626 = vpack.c.bf16 %v619, %v618
        %v627 = vpack.c.bf16 %v621, %v620
        %v628 = vrot.slane %v344, 7
        %v629 = vrot.slane %v345, 7
        %v630 = vrot.slane %v346, 7
        %v631 = vrot.slane %v347, 7
        %v632 = vrot.slane %v348, 7
        %v633 = vrot.slane %v349, 7
        %v634 = vrot.slane %v350, 7
        %v635 = vrot.slane %v351, 7
        %v636 = vrot.slane %v352, 7
        %v637 = vrot.slane %v353, 7
        %v638 = vrot.slane %v354, 7
        %v639 = vrot.slane %v355, 7
        %vm640 = vcmp.lt.s32.totalorder %v357, 1
        %v641 = vsel %vm640, %v638, %v639
        %v642 = vsel %vm640, %v637, %v638
        %v643 = vsel %vm640, %v636, %v637
        %v644 = vsel %vm640, %v635, %v636
        %v645 = vsel %vm640, %v634, %v635
        %v646 = vsel %vm640, %v633, %v634
        %v647 = vsel %vm640, %v632, %v633
        %v648 = vsel %vm640, %v631, %v632
        %v649 = vsel %vm640, %v630, %v631
        %v650 = vsel %vm640, %v629, %v630
        %v651 = vsel %vm640, %v628, %v629
        %v652 = vsel %vm640, %v639, %v628
        %v653 = vsel %vm453, 1, 0
        %v654 = vsel %vm454, 1, 0
        %v655 = vsel %vm455, 1, 0
        %v656 = vsel %vm456, 1, 0
        %v657 = vsel %vm457, 1, 0
        %v658 = vsel %vm458, 1, 0
        %v659 = vsel %vm459, 1, 0
        %v660 = vsel %vm460, 1, 0
        %v661 = vsel %vm461, 1, 0
        %v662 = vsel %vm462, 1, 0
        %v663 = vsel %vm463, 1, 0
        %v664 = vsel %vm464, 1, 0
        %vm665 = vcmp.eq.s32.totalorder %v653, 1
        %vm666 = vcmp.eq.s32.totalorder %v654, 1
        %vm667 = vcmp.eq.s32.totalorder %v655, 1
        %vm668 = vcmp.eq.s32.totalorder %v656, 1
        %vm669 = vcmp.eq.s32.totalorder %v657, 1
        %vm670 = vcmp.eq.s32.totalorder %v658, 1
        %vm671 = vcmp.eq.s32.totalorder %v659, 1
        %vm672 = vcmp.eq.s32.totalorder %v660, 1
        %vm673 = vcmp.eq.s32.totalorder %v661, 1
        %vm674 = vcmp.eq.s32.totalorder %v662, 1
        %vm675 = vcmp.eq.s32.totalorder %v663, 1
        %vm676 = vcmp.eq.s32.totalorder %v664, 1
        %v677 = vsel %vm665, %v652, 0.0
        %v678 = vsel %vm666, %v651, 0.0
        %v679 = vsel %vm667, %v650, 0.0
        %v680 = vsel %vm668, %v649, 0.0
        %v681 = vsel %vm669, %v648, 0.0
        %v682 = vsel %vm670, %v647, 0.0
        %v683 = vsel %vm671, %v646, 0.0
        %v684 = vsel %vm672, %v645, 0.0
        %v685 = vsel %vm673, %v644, 0.0
        %v686 = vsel %vm674, %v643, 0.0
        %v687 = vsel %vm675, %v642, 0.0
        %v688 = vsel %vm676, %v641, 0.0
        %v689 = vpack.c.bf16 %v678, %v677
        %v690 = vpack.c.bf16 %v680, %v679
        %v691 = vpack.c.bf16 %v682, %v681
        %v692 = vpack.c.bf16 %v684, %v683
        %v693 = vpack.c.bf16 %v686, %v685
        %v694 = vpack.c.bf16 %v688, %v687
        %v695 = vrot.slane %v344, 1
        %v696 = vrot.slane %v345, 1
        %v697 = vrot.slane %v346, 1
        %v698 = vrot.slane %v347, 1
        %v699 = vrot.slane %v348, 1
        %v700 = vrot.slane %v349, 1
        %v701 = vrot.slane %v350, 1
        %v702 = vrot.slane %v351, 1
        %v703 = vrot.slane %v352, 1
        %v704 = vrot.slane %v353, 1
        %v705 = vrot.slane %v354, 1
        %v706 = vrot.slane %v355, 1
        %vm707 = vcmp.lt.s32.totalorder %v357, 7
        %v708 = vsel %vm707, %v705, %v706
        %v709 = vsel %vm707, %v704, %v705
        %v710 = vsel %vm707, %v703, %v704
        %v711 = vsel %vm707, %v702, %v703
        %v712 = vsel %vm707, %v701, %v702
        %v713 = vsel %vm707, %v700, %v701
        %v714 = vsel %vm707, %v699, %v700
        %v715 = vsel %vm707, %v698, %v699
        %v716 = vsel %vm707, %v697, %v698
        %v717 = vsel %vm707, %v696, %v697
        %v718 = vsel %vm707, %v695, %v696
        %v719 = vsel %vm707, %v706, %v695
        %v720 = vsel %vm501, 1, 0
        %v721 = vsel %vm502, 1, 0
        %v722 = vsel %vm503, 1, 0
        %v723 = vsel %vm504, 1, 0
        %v724 = vsel %vm505, 1, 0
        %v725 = vsel %vm506, 1, 0
        %v726 = vsel %vm507, 1, 0
        %v727 = vsel %vm508, 1, 0
        %v728 = vsel %vm509, 1, 0
        %v729 = vsel %vm510, 1, 0
        %v730 = vsel %vm511, 1, 0
        %v731 = vsel %vm512, 1, 0
        %vm732 = vcmp.eq.s32.totalorder %v720, 1
        %vm733 = vcmp.eq.s32.totalorder %v721, 1
        %vm734 = vcmp.eq.s32.totalorder %v722, 1
        %vm735 = vcmp.eq.s32.totalorder %v723, 1
        %vm736 = vcmp.eq.s32.totalorder %v724, 1
        %vm737 = vcmp.eq.s32.totalorder %v725, 1
        %vm738 = vcmp.eq.s32.totalorder %v726, 1
        %vm739 = vcmp.eq.s32.totalorder %v727, 1
        %vm740 = vcmp.eq.s32.totalorder %v728, 1
        %vm741 = vcmp.eq.s32.totalorder %v729, 1
        %vm742 = vcmp.eq.s32.totalorder %v730, 1
        %vm743 = vcmp.eq.s32.totalorder %v731, 1
        %v744 = vsel %vm732, %v718, 0.0
        %v745 = vsel %vm733, %v717, 0.0
        %v746 = vsel %vm734, %v716, 0.0
        %v747 = vsel %vm735, %v715, 0.0
        %v748 = vsel %vm736, %v714, 0.0
        %v749 = vsel %vm737, %v713, 0.0
        %v750 = vsel %vm738, %v712, 0.0
        %v751 = vsel %vm739, %v711, 0.0
        %v752 = vsel %vm740, %v710, 0.0
        %v753 = vsel %vm741, %v709, 0.0
        %v754 = vsel %vm742, %v708, 0.0
        %v755 = vsel %vm743, %v719, 0.0
        %v756 = vpack.c.bf16 %v745, %v744
        %v757 = vpack.c.bf16 %v747, %v746
        %v758 = vpack.c.bf16 %v749, %v748
        %v759 = vpack.c.bf16 %v751, %v750
        %v760 = vpack.c.bf16 %v753, %v752
        %v761 = vpack.c.bf16 %v755, %v754
        %v762 = vrot.slane %v344, 2
        %v763 = vrot.slane %v345, 2
        %v764 = vrot.slane %v346, 2
        %v765 = vrot.slane %v347, 2
        %v766 = vrot.slane %v348, 2
        %v767 = vrot.slane %v349, 2
        %v768 = vrot.slane %v350, 2
        %v769 = vrot.slane %v351, 2
        %v770 = vrot.slane %v352, 2
        %v771 = vrot.slane %v353, 2
        %v772 = vrot.slane %v354, 2
        %v773 = vrot.slane %v355, 2
        %vm774 = vcmp.lt.s32.totalorder %v357, 6
        %v775 = vsel %vm774, %v772, %v773
        %v776 = vsel %vm774, %v771, %v772
        %v777 = vsel %vm774, %v770, %v771
        %v778 = vsel %vm774, %v769, %v770
        %v779 = vsel %vm774, %v768, %v769
        %v780 = vsel %vm774, %v767, %v768
        %v781 = vsel %vm774, %v766, %v767
        %v782 = vsel %vm774, %v765, %v766
        %v783 = vsel %vm774, %v764, %v765
        %v784 = vsel %vm774, %v763, %v764
        %v785 = vsel %vm774, %v762, %v763
        %v786 = vsel %vm774, %v773, %v762
        %v787 = vsel %vm549, 1, 0
        %v788 = vsel %vm550, 1, 0
        %v789 = vsel %vm551, 1, 0
        %v790 = vsel %vm552, 1, 0
        %v791 = vsel %vm553, 1, 0
        %v792 = vsel %vm554, 1, 0
        %v793 = vsel %vm555, 1, 0
        %v794 = vsel %vm556, 1, 0
        %v795 = vsel %vm557, 1, 0
        %v796 = vsel %vm558, 1, 0
        %v797 = vsel %vm559, 1, 0
        %v798 = vsel %vm560, 1, 0
        %vm799 = vcmp.eq.s32.totalorder %v787, 1
        %vm800 = vcmp.eq.s32.totalorder %v788, 1
        %vm801 = vcmp.eq.s32.totalorder %v789, 1
        %vm802 = vcmp.eq.s32.totalorder %v790, 1
        %vm803 = vcmp.eq.s32.totalorder %v791, 1
        %vm804 = vcmp.eq.s32.totalorder %v792, 1
        %vm805 = vcmp.eq.s32.totalorder %v793, 1
        %vm806 = vcmp.eq.s32.totalorder %v794, 1
        %vm807 = vcmp.eq.s32.totalorder %v795, 1
        %vm808 = vcmp.eq.s32.totalorder %v796, 1
        %vm809 = vcmp.eq.s32.totalorder %v797, 1
        %vm810 = vcmp.eq.s32.totalorder %v798, 1
        %v811 = vsel %vm799, %v785, 0.0
        %v812 = vsel %vm800, %v784, 0.0
        %v813 = vsel %vm801, %v783, 0.0
        %v814 = vsel %vm802, %v782, 0.0
        %v815 = vsel %vm803, %v781, 0.0
        %v816 = vsel %vm804, %v780, 0.0
        %v817 = vsel %vm805, %v779, 0.0
        %v818 = vsel %vm806, %v778, 0.0
        %v819 = vsel %vm807, %v777, 0.0
        %v820 = vsel %vm808, %v776, 0.0
        %v821 = vsel %vm809, %v775, 0.0
        %v822 = vsel %vm810, %v786, 0.0
        %v823 = vpack.c.bf16 %v812, %v811
        %v824 = vpack.c.bf16 %v814, %v813
        %v825 = vpack.c.bf16 %v816, %v815
        %v826 = vpack.c.bf16 %v818, %v817
        %v827 = vpack.c.bf16 %v820, %v819
        %v828 = vpack.c.bf16 %v822, %v821
        %v841 = vunpack.c.l.b16 %v332
        %v842 = vunpack.c.l.b16 %v333
        %v843 = vunpack.c.l.b16 %v334
        %v844 = vunpack.c.l.b16 %v335
        %v845 = vunpack.c.l.b16 %v336
        %v846 = vunpack.c.l.b16 %v337
        %v847 = vunpack.c.l.b16 %v338
        %v848 = vunpack.c.l.b16 %v339
        %v849 = vunpack.c.l.b16 %v340
        %v850 = vunpack.c.l.b16 %v341
        %v851 = vunpack.c.l.b16 %v342
        %v852 = vunpack.c.l.b16 %v343
        %v853 = vpack.c.b16 %v842, %v841
        %v854 = vpack.c.b16 %v844, %v843
        %v855 = vpack.c.b16 %v846, %v845
        %v856 = vpack.c.b16 %v848, %v847
        %v857 = vpack.c.b16 %v850, %v849
        %v858 = vpack.c.b16 %v852, %v851
        %v865 = vld [vmem:[%s1] sm:$0xff]
        %v866 = vld [vmem:[%s1 + $0x8] sm:$0xff]
        %v867 = vld [vmem:[%s1 + $0x10] sm:$0xff]
        %v868 = vld [vmem:[%s1 + $0x18] sm:$0xff]
        %v869 = vld [vmem:[%s1 + $0x20] sm:$0xff]
        %v870 = vld [vmem:[%s1 + $0x28] sm:$0xff]
        %v871 = vld [vmem:[%s1 + $0x30] sm:$0xff]
        %v872 = vld [vmem:[%s1 + $0x38] sm:$0xff]
        %v873 = vld [vmem:[%s1 + $0x40] sm:$0xff]
        %v874 = vld [vmem:[%s1 + $0x48] sm:$0xff]
        %v875 = vld [vmem:[%s1 + $0x50] sm:$0xff]
        %v876 = vld [vmem:[%s1 + $0x58] sm:$0xff]
        %v877 = vld [vmem:[%s1 + $0x60] sm:$0xff]
        %v878 = vld [vmem:[%s1 + $0x68] sm:$0xff]
        %v879 = vld [vmem:[%s1 + $0x70] sm:$0xff]
        %v880 = vld [vmem:[%s1 + $0x78] sm:$0xff]
        %v881 = vld [vmem:[%s1 + $0x80] sm:$0xff]
        %v882 = vld [vmem:[%s1 + $0x88] sm:$0xff]
        %v883 = vld [vmem:[%s1 + $0x90] sm:$0xff]
        %v884 = vld [vmem:[%s1 + $0x98] sm:$0xff]
        %v885 = vld [vmem:[%s1 + $0xa0] sm:$0xff]
        %v886 = vld [vmem:[%s1 + $0xa8] sm:$0xff]
        %v887 = vld [vmem:[%s1 + $0xb0] sm:$0xff]
        %v888 = vld [vmem:[%s1 + $0xb8] sm:$0xff]
        %v889 = vld [vmem:[%s1 + $0xc0] sm:$0xff]
        %v890 = vld [vmem:[%s1 + $0xc8] sm:$0xff]
        %v891 = vld [vmem:[%s1 + $0xd0] sm:$0xff]
        %v892 = vld [vmem:[%s1 + $0xd8] sm:$0xff]
        %v893 = vld [vmem:[%s1 + $0xe0] sm:$0xff]
        %v894 = vld [vmem:[%s1 + $0xe8] sm:$0xff]
        %v895 = vld [vmem:[%s1 + $0xf0] sm:$0xff]
        %v896 = vld [vmem:[%s1 + $0xf8] sm:$0xff]
        %v897 = vld [vmem:[%s1 + $0x100] sm:$0xff]
        %v898 = vld [vmem:[%s1 + $0x108] sm:$0xff]
        %v899 = vld [vmem:[%s1 + $0x110] sm:$0xff]
        %v900 = vld [vmem:[%s1 + $0x118] sm:$0xff]
        %v901 = vld [vmem:[%s1 + $0x120] sm:$0xff]
        %v902 = vld [vmem:[%s1 + $0x128] sm:$0xff]
        %v903 = vld [vmem:[%s1 + $0x130] sm:$0xff]
        %v904 = vld [vmem:[%s1 + $0x138] sm:$0xff]
        %v905 = vld [vmem:[%s1 + $0x140] sm:$0xff]
        %v906 = vld [vmem:[%s1 + $0x148] sm:$0xff]
        %v907 = vld [vmem:[%s1 + $0x150] sm:$0xff]
        %v908 = vld [vmem:[%s1 + $0x158] sm:$0xff]
        %v909 = vld [vmem:[%s1 + $0x160] sm:$0xff]
        %v910 = vld [vmem:[%s1 + $0x168] sm:$0xff]
        %v911 = vld [vmem:[%s1 + $0x170] sm:$0xff]
        %v912 = vld [vmem:[%s1 + $0x178] sm:$0xff]
        %v913 = vld [vmem:[%s1 + $0x180] sm:$0xff]
        %v914 = vld [vmem:[%s1 + $0x188] sm:$0xff]
        %v915 = vld [vmem:[%s1 + $0x190] sm:$0xff]
        %v916 = vld [vmem:[%s1 + $0x198] sm:$0xff]
        %v917 = vld [vmem:[%s1 + $0x1a0] sm:$0xff]
        %v918 = vld [vmem:[%s1 + $0x1a8] sm:$0xff]
        %v919 = vld [vmem:[%s1 + $0x1b0] sm:$0xff]
        %v920 = vld [vmem:[%s1 + $0x1b8] sm:$0xff]
        %v921 = vld [vmem:[%s1 + $0x1c0] sm:$0xff]
        %v922 = vld [vmem:[%s1 + $0x1c8] sm:$0xff]
        %v923 = vld [vmem:[%s1 + $0x1d0] sm:$0xff]
        %v924 = vld [vmem:[%s1 + $0x1d8] sm:$0xff]
        %v925 = vld [vmem:[%s1 + $0x1e0] sm:$0xff]
        %v926 = vld [vmem:[%s1 + $0x1e8] sm:$0xff]
        %v927 = vld [vmem:[%s1 + $0x1f0] sm:$0xff]
        %v928 = vld [vmem:[%s1 + $0x1f8] sm:$0xff]
        %v929 = vld [vmem:[%s1 + $0x200] sm:$0xff]
        %v930 = vld [vmem:[%s1 + $0x208] sm:$0xff]
        %v931 = vld [vmem:[%s1 + $0x210] sm:$0xff]
        %v932 = vld [vmem:[%s1 + $0x218] sm:$0xff]
        %v933 = vld [vmem:[%s1 + $0x220] sm:$0xff]
        %v934 = vld [vmem:[%s1 + $0x228] sm:$0xff]
        %v935 = vld [vmem:[%s1 + $0x230] sm:$0xff]
        %v936 = vld [vmem:[%s1 + $0x238] sm:$0xff]
        %v937 = vld [vmem:[%s1 + $0x240] sm:$0xff]
        %v938 = vld [vmem:[%s1 + $0x248] sm:$0xff]
        %v939 = vld [vmem:[%s1 + $0x250] sm:$0xff]
        %v940 = vld [vmem:[%s1 + $0x258] sm:$0xff]
        %v941 = vld [vmem:[%s1 + $0x260] sm:$0xff]
        %v942 = vld [vmem:[%s1 + $0x268] sm:$0xff]
        %v943 = vld [vmem:[%s1 + $0x270] sm:$0xff]
        %v944 = vld [vmem:[%s1 + $0x278] sm:$0xff]
        %v945 = vld [vmem:[%s2] sm:$0x3]
        %v947 = vlaneseq
        %v948 = vshrl.u32 %v947, 7
        %v949 = vsub.s32 0, %v948
        %v950 = vrot.slane %v945, %v949
        %v951 = vlaneseq
        %v952 = vshrl.u32 %v951, 7
        %v953 = vsub.s32 1, %v952
        %v954 = vrot.slane %v945, %v953
        %v1037 = vunpack.c.l.b16 %v865
        %v1038 = vunpack.c.h.b16 %v865
        %v1039 = vunpack.c.l.b16 %v866
        %v1040 = vunpack.c.h.b16 %v866
        %v1041 = vunpack.c.l.b16 %v867
        %v1042 = vunpack.c.h.b16 %v867
        %v1043 = vunpack.c.l.b16 %v868
        %v1044 = vunpack.c.h.b16 %v868
        %v1045 = vunpack.c.l.b16 %v869
        %v1046 = vunpack.c.h.b16 %v869
        %v1047 = vunpack.c.l.b16 %v870
        %v1048 = vunpack.c.h.b16 %v870
        %v1049 = vunpack.c.l.b16 %v871
        %v1050 = vunpack.c.h.b16 %v871
        %v1051 = vunpack.c.l.b16 %v872
        %v1052 = vunpack.c.h.b16 %v872
        %v1053 = vunpack.c.l.b16 %v873
        %v1054 = vunpack.c.h.b16 %v873
        %v1055 = vunpack.c.l.b16 %v874
        %v1056 = vunpack.c.h.b16 %v874
        %v1057 = vunpack.c.l.b16 %v875
        %v1058 = vunpack.c.h.b16 %v875
        %v1059 = vunpack.c.l.b16 %v876
        %v1060 = vunpack.c.h.b16 %v876
        %v1061 = vunpack.c.l.b16 %v877
        %v1062 = vunpack.c.h.b16 %v877
        %v1063 = vunpack.c.l.b16 %v878
        %v1064 = vunpack.c.h.b16 %v878
        %v1065 = vunpack.c.l.b16 %v879
        %v1066 = vunpack.c.h.b16 %v879
        %v1067 = vunpack.c.l.b16 %v880
        %v1068 = vunpack.c.h.b16 %v880
        %v1069 = vunpack.c.l.b16 %v881
        %v1070 = vunpack.c.h.b16 %v881
        %v1071 = vunpack.c.l.b16 %v882
        %v1072 = vunpack.c.h.b16 %v882
        %v1073 = vunpack.c.l.b16 %v883
        %v1074 = vunpack.c.h.b16 %v883
        %v1075 = vunpack.c.l.b16 %v884
        %v1076 = vunpack.c.h.b16 %v884
        %v1077 = vunpack.c.l.b16 %v885
        %v1078 = vunpack.c.h.b16 %v885
        %v1079 = vunpack.c.l.b16 %v886
        %v1080 = vunpack.c.h.b16 %v886
        %v1081 = vunpack.c.l.b16 %v887
        %v1082 = vunpack.c.h.b16 %v887
        %v1083 = vunpack.c.l.b16 %v888
        %v1084 = vunpack.c.h.b16 %v888
        %v1085 = vunpack.c.l.b16 %v889
        %v1086 = vunpack.c.h.b16 %v889
        %v1087 = vunpack.c.l.b16 %v890
        %v1088 = vunpack.c.h.b16 %v890
        %v1089 = vunpack.c.l.b16 %v891
        %v1090 = vunpack.c.h.b16 %v891
        %v1091 = vunpack.c.l.b16 %v892
        %v1092 = vunpack.c.h.b16 %v892
        %v1093 = vunpack.c.l.b16 %v893
        %v1094 = vunpack.c.h.b16 %v893
        %v1095 = vunpack.c.l.b16 %v894
        %v1096 = vunpack.c.h.b16 %v894
        %v1097 = vunpack.c.l.b16 %v895
        %v1098 = vunpack.c.h.b16 %v895
        %v1099 = vunpack.c.l.b16 %v896
        %v1100 = vunpack.c.h.b16 %v896
        %v1101 = vunpack.c.l.b16 %v897
        %v1102 = vunpack.c.h.b16 %v897
        %v1103 = vunpack.c.l.b16 %v898
        %v1104 = vunpack.c.h.b16 %v898
        %v1105 = vunpack.c.l.b16 %v899
        %v1106 = vunpack.c.h.b16 %v899
        %v1107 = vunpack.c.l.b16 %v900
        %v1108 = vunpack.c.h.b16 %v900
        %v1109 = vunpack.c.l.b16 %v901
        %v1110 = vunpack.c.h.b16 %v901
        %v1111 = vunpack.c.l.b16 %v902
        %v1112 = vunpack.c.h.b16 %v902
        %v1113 = vunpack.c.l.b16 %v903
        %v1114 = vunpack.c.h.b16 %v903
        %v1115 = vunpack.c.l.b16 %v904
        %v1116 = vunpack.c.h.b16 %v904
        %v1117 = vunpack.c.l.b16 %v905
        %v1118 = vunpack.c.h.b16 %v905
        %v1119 = vunpack.c.l.b16 %v906
        %v1120 = vunpack.c.h.b16 %v906
        %v1121 = vunpack.c.l.b16 %v907
        %v1122 = vunpack.c.h.b16 %v907
        %v1123 = vunpack.c.l.b16 %v908
        %v1124 = vunpack.c.h.b16 %v908
        %v1125 = vunpack.c.l.b16 %v909
        %v1126 = vunpack.c.h.b16 %v909
        %v1127 = vunpack.c.l.b16 %v910
        %v1128 = vunpack.c.h.b16 %v910
        %v1129 = vunpack.c.l.b16 %v911
        %v1130 = vunpack.c.h.b16 %v911
        %v1131 = vunpack.c.l.b16 %v912
        %v1132 = vunpack.c.h.b16 %v912
        %v1133 = vunpack.c.l.b16 %v913
        %v1134 = vunpack.c.h.b16 %v913
        %v1135 = vunpack.c.l.b16 %v914
        %v1136 = vunpack.c.h.b16 %v914
        %v1137 = vunpack.c.l.b16 %v915
        %v1138 = vunpack.c.h.b16 %v915
        %v1139 = vunpack.c.l.b16 %v916
        %v1140 = vunpack.c.h.b16 %v916
        %v1141 = vunpack.c.l.b16 %v917
        %v1142 = vunpack.c.h.b16 %v917
        %v1143 = vunpack.c.l.b16 %v918
        %v1144 = vunpack.c.h.b16 %v918
        %v1145 = vunpack.c.l.b16 %v919
        %v1146 = vunpack.c.h.b16 %v919
        %v1147 = vunpack.c.l.b16 %v920
        %v1148 = vunpack.c.h.b16 %v920
        %v1149 = vunpack.c.l.b16 %v921
        %v1150 = vunpack.c.h.b16 %v921
        %v1151 = vunpack.c.l.b16 %v922
        %v1152 = vunpack.c.h.b16 %v922
        %v1153 = vunpack.c.l.b16 %v923
        %v1154 = vunpack.c.h.b16 %v923
        %v1155 = vunpack.c.l.b16 %v924
        %v1156 = vunpack.c.h.b16 %v924
        %v1157 = vunpack.c.l.b16 %v925
        %v1158 = vunpack.c.h.b16 %v925
        %v1159 = vunpack.c.l.b16 %v926
        %v1160 = vunpack.c.h.b16 %v926
        %v1161 = vunpack.c.l.b16 %v927
        %v1162 = vunpack.c.h.b16 %v927
        %v1163 = vunpack.c.l.b16 %v928
        %v1164 = vunpack.c.h.b16 %v928
        %v1165 = vunpack.c.l.b16 %v929
        %v1166 = vunpack.c.h.b16 %v929
        %v1167 = vunpack.c.l.b16 %v930
        %v1168 = vunpack.c.h.b16 %v930
        %v1169 = vunpack.c.l.b16 %v931
        %v1170 = vunpack.c.h.b16 %v931
        %v1171 = vunpack.c.l.b16 %v932
        %v1172 = vunpack.c.h.b16 %v932
        %v1173 = vunpack.c.l.b16 %v933
        %v1174 = vunpack.c.h.b16 %v933
        %v1175 = vunpack.c.l.b16 %v934
        %v1176 = vunpack.c.h.b16 %v934
        %v1177 = vunpack.c.l.b16 %v935
        %v1178 = vunpack.c.h.b16 %v935
        %v1179 = vunpack.c.l.b16 %v936
        %v1180 = vunpack.c.h.b16 %v936
        %v1181 = vunpack.c.l.b16 %v937
        %v1182 = vunpack.c.h.b16 %v937
        %v1183 = vunpack.c.l.b16 %v938
        %v1184 = vunpack.c.h.b16 %v938
        %v1185 = vunpack.c.l.b16 %v939
        %v1186 = vunpack.c.h.b16 %v939
        %v1187 = vunpack.c.l.b16 %v940
        %v1188 = vunpack.c.h.b16 %v940
        %v1189 = vunpack.c.l.b16 %v941
        %v1190 = vunpack.c.h.b16 %v941
        %v1191 = vunpack.c.l.b16 %v942
        %v1192 = vunpack.c.h.b16 %v942
        %v1193 = vunpack.c.l.b16 %v943
        %v1194 = vunpack.c.h.b16 %v943
        %v1195 = vunpack.c.l.b16 %v944
        %v1196 = vunpack.c.h.b16 %v944
        %v1197 = vpack.c.b16 %v1039, %v1037
        %v1198 = vpack.c.b16 %v1040, %v1038
        %v1199 = vpack.c.b16 %v1043, %v1041
        %v1200 = vpack.c.b16 %v1044, %v1042
        %v1201 = vpack.c.b16 %v1047, %v1045
        %v1202 = vpack.c.b16 %v1048, %v1046
        %v1203 = vpack.c.b16 %v1051, %v1049
        %v1204 = vpack.c.b16 %v1052, %v1050
        %v1205 = vpack.c.b16 %v1055, %v1053
        %v1206 = vpack.c.b16 %v1056, %v1054
        %v1207 = vpack.c.b16 %v1059, %v1057
        %v1208 = vpack.c.b16 %v1060, %v1058
        %v1209 = vpack.c.b16 %v1063, %v1061
        %v1210 = vpack.c.b16 %v1064, %v1062
        %v1211 = vpack.c.b16 %v1067, %v1065
        %v1212 = vpack.c.b16 %v1068, %v1066
        %v1213 = vpack.c.b16 %v1071, %v1069
        %v1214 = vpack.c.b16 %v1072, %v1070
        %v1215 = vpack.c.b16 %v1075, %v1073
        %v1216 = vpack.c.b16 %v1076, %v1074
        %v1217 = vpack.c.b16 %v1079, %v1077
        %v1218 = vpack.c.b16 %v1080, %v1078
        %v1219 = vpack.c.b16 %v1083, %v1081
        %v1220 = vpack.c.b16 %v1084, %v1082
        %v1221 = vpack.c.b16 %v1087, %v1085
        %v1222 = vpack.c.b16 %v1088, %v1086
        %v1223 = vpack.c.b16 %v1091, %v1089
        %v1224 = vpack.c.b16 %v1092, %v1090
        %v1225 = vpack.c.b16 %v1095, %v1093
        %v1226 = vpack.c.b16 %v1096, %v1094
        %v1227 = vpack.c.b16 %v1099, %v1097
        %v1228 = vpack.c.b16 %v1100, %v1098
        %v1229 = vpack.c.b16 %v1103, %v1101
        %v1230 = vpack.c.b16 %v1104, %v1102
        %v1231 = vpack.c.b16 %v1107, %v1105
        %v1232 = vpack.c.b16 %v1108, %v1106
        %v1233 = vpack.c.b16 %v1111, %v1109
        %v1234 = vpack.c.b16 %v1112, %v1110
        %v1235 = vpack.c.b16 %v1115, %v1113
        %v1236 = vpack.c.b16 %v1116, %v1114
        %v1237 = vpack.c.b16 %v1119, %v1117
        %v1238 = vpack.c.b16 %v1120, %v1118
        %v1239 = vpack.c.b16 %v1123, %v1121
        %v1240 = vpack.c.b16 %v1124, %v1122
        %v1241 = vpack.c.b16 %v1127, %v1125
        %v1242 = vpack.c.b16 %v1128, %v1126
        %v1243 = vpack.c.b16 %v1131, %v1129
        %v1244 = vpack.c.b16 %v1132, %v1130
        %v1245 = vpack.c.b16 %v1135, %v1133
        %v1246 = vpack.c.b16 %v1136, %v1134
        %v1247 = vpack.c.b16 %v1139, %v1137
        %v1248 = vpack.c.b16 %v1140, %v1138
        %v1249 = vpack.c.b16 %v1143, %v1141
        %v1250 = vpack.c.b16 %v1144, %v1142
        %v1251 = vpack.c.b16 %v1147, %v1145
        %v1252 = vpack.c.b16 %v1148, %v1146
        %v1253 = vpack.c.b16 %v1151, %v1149
        %v1254 = vpack.c.b16 %v1152, %v1150
        %v1255 = vpack.c.b16 %v1155, %v1153
        %v1256 = vpack.c.b16 %v1156, %v1154
        %v1257 = vpack.c.b16 %v1159, %v1157
        %v1258 = vpack.c.b16 %v1160, %v1158
        %v1259 = vpack.c.b16 %v1163, %v1161
        %v1260 = vpack.c.b16 %v1164, %v1162
        %v1261 = vpack.c.b16 %v1167, %v1165
        %v1262 = vpack.c.b16 %v1168, %v1166
        %v1263 = vpack.c.b16 %v1171, %v1169
        %v1264 = vpack.c.b16 %v1172, %v1170
        %v1265 = vpack.c.b16 %v1175, %v1173
        %v1266 = vpack.c.b16 %v1176, %v1174
        %v1267 = vpack.c.b16 %v1179, %v1177
        %v1268 = vpack.c.b16 %v1180, %v1178
        %v1269 = vpack.c.b16 %v1183, %v1181
        %v1270 = vpack.c.b16 %v1184, %v1182
        %v1271 = vpack.c.b16 %v1187, %v1185
        %v1272 = vpack.c.b16 %v1188, %v1186
        %v1273 = vpack.c.b16 %v1191, %v1189
        %v1274 = vpack.c.b16 %v1192, %v1190
        %v1275 = vpack.c.b16 %v1195, %v1193
        %v1276 = vpack.c.b16 %v1196, %v1194
        %1357 = vmatprep.subr.bf16.mxu0 %v1198
        %1358 = vmatpush1.bf16.msra.mxu0 %v1197
        %1359 = vmatprep.subr.bf16.mxu0 %v1200
        %1360 = vmatpush1.bf16.msra.mxu0 %v1199
        %1361 = vmatprep.subr.bf16.mxu0 %v1202
        %1362 = vmatpush1.bf16.msra.mxu0 %v1201
        %1363 = vmatprep.subr.bf16.mxu0 %v1204
        %1364 = vmatpush1.bf16.msra.mxu0 %v1203
        %1365 = vmatprep.subr.bf16.mxu0 %v1206
        %1366 = vmatpush1.bf16.msra.mxu0 %v1205
        %1367 = vmatprep.subr.bf16.mxu0 %v1208
        %1368 = vmatpush1.bf16.msra.mxu0 %v1207
        %1369 = vmatprep.subr.bf16.mxu0 %v1210
        %1370 = vmatpush1.bf16.msra.mxu0 %v1209
        %1371 = vmatprep.subr.bf16.mxu0 %v1212
        %1372 = vmatpush1.bf16.msra.mxu0 %v1211
        %1373 = vmatprep.subr.bf16.mxu0 %v1214
        %1374 = vmatpush1.bf16.msra.mxu0 %v1213
        %1375 = vmatprep.subr.bf16.mxu0 %v1216
        %1376 = vmatpush1.bf16.msra.mxu0 %v1215
        %1377 = vmatprep.subr.bf16.mxu0 %v1218
        %1378 = vmatpush1.bf16.msra.mxu0 %v1217
        %1379 = vmatprep.subr.bf16.mxu0 %v1220
        %1380 = vmatpush1.bf16.msra.mxu0 %v1219
        %1381 = vmatprep.subr.bf16.mxu0 %v1222
        %1382 = vmatpush1.bf16.msra.mxu0 %v1221
        %1383 = vmatprep.subr.bf16.mxu0 %v1224
        %1384 = vmatpush1.bf16.msra.mxu0 %v1223
        %1385 = vmatprep.subr.bf16.mxu0 %v1226
        %1386 = vmatpush1.bf16.msra.mxu0 %v1225
        %1387 = vmatprep.subr.bf16.mxu0 %v1228
        %1388 = vmatpush1.bf16.msra.mxu0 %v1227
        %1389 = vmatprep.mubr.bf16.mxu0 %v689
        %1390 = vmatmul.mubr.bf16.gmra.mrb[0].mxu0 %v622
        %v1391 = vpop.f32.mrb[0].mxu0
        %v1392 = vadd.f32 %v950, %v1391
        %v1393 = vpop.f32.mrb[0].mxu0
        %v1394 = vadd.f32 %v954, %v1393
        %v1395 = vpop.f32.mrb[0].mxu0
        %v1396 = vadd.f32 %v950, %v1395
        %v1397 = vpop.f32.mrb[0].mxu0
        %v1398 = vadd.f32 %v954, %v1397
        %1399 = vmatprep.mubr.bf16.mxu0 %v690
        %1400 = vmatmul.mubr.bf16.gmra.mrb[0].mxu0 %v623
        %v1401 = vpop.f32.mrb[0].mxu0
        %v1402 = vadd.f32 %v950, %v1401
        %v1403 = vpop.f32.mrb[0].mxu0
        %v1404 = vadd.f32 %v954, %v1403
        %v1405 = vpop.f32.mrb[0].mxu0
        %v1406 = vadd.f32 %v950, %v1405
        %v1407 = vpop.f32.mrb[0].mxu0
        %v1408 = vadd.f32 %v954, %v1407
        %1409 = vmatprep.mubr.bf16.mxu0 %v691
        %1410 = vmatmul.mubr.bf16.gmra.mrb[0].mxu0 %v624
        %v1411 = vpop.f32.mrb[0].mxu0
        %v1412 = vadd.f32 %v950, %v1411
        %v1413 = vpop.f32.mrb[0].mxu0
        %v1414 = vadd.f32 %v954, %v1413
        %v1415 = vpop.f32.mrb[0].mxu0
        %v1416 = vadd.f32 %v950, %v1415
        %v1417 = vpop.f32.mrb[0].mxu0
        %v1418 = vadd.f32 %v954, %v1417
        %1419 = vmatprep.mubr.bf16.mxu0 %v692
        %1420 = vmatmul.mubr.bf16.gmra.mrb[0].mxu0 %v625
        %v1421 = vpop.f32.mrb[0].mxu0
        %v1422 = vadd.f32 %v950, %v1421
        %v1423 = vpop.f32.mrb[0].mxu0
        %v1424 = vadd.f32 %v954, %v1423
        %v1425 = vpop.f32.mrb[0].mxu0
        %v1426 = vadd.f32 %v950, %v1425
        %v1427 = vpop.f32.mrb[0].mxu0
        %v1428 = vadd.f32 %v954, %v1427
        %1429 = vmatprep.mubr.bf16.mxu0 %v693
        %1430 = vmatmul.mubr.bf16.gmra.mrb[0].mxu0 %v626
        %v1431 = vpop.f32.mrb[0].mxu0
        %v1432 = vadd.f32 %v950, %v1431
        %v1433 = vpop.f32.mrb[0].mxu0
        %v1434 = vadd.f32 %v954, %v1433
        %v1435 = vpop.f32.mrb[0].mxu0
        %v1436 = vadd.f32 %v950, %v1435
        %v1437 = vpop.f32.mrb[0].mxu0
        %v1438 = vadd.f32 %v954, %v1437
        %1439 = vmatprep.mubr.bf16.mxu0 %v694
        %1440 = vmatmul.mubr.bf16.gmra.mrb[0].mxu0 %v627
        %v1441 = vpop.f32.mrb[0].mxu0
        %v1442 = vadd.f32 %v950, %v1441
        %v1443 = vpop.f32.mrb[0].mxu0
        %v1444 = vadd.f32 %v954, %v1443
        %v1445 = vpop.f32.mrb[0].mxu0
        %v1446 = vadd.f32 %v950, %v1445
        %v1447 = vpop.f32.mrb[0].mxu0
        %v1448 = vadd.f32 %v954, %v1447
        %1449 = vdwg.mxu0
        %1450 = vmatprep.subr.bf16.mxu0 %v1230
        %1451 = vmatpush1.bf16.msra.mxu0 %v1229
        %1452 = vmatprep.subr.bf16.mxu0 %v1232
        %1453 = vmatpush1.bf16.msra.mxu0 %v1231
        %1454 = vmatprep.subr.bf16.mxu0 %v1234
        %1455 = vmatpush1.bf16.msra.mxu0 %v1233
        %1456 = vmatprep.subr.bf16.mxu0 %v1236
        %1457 = vmatpush1.bf16.msra.mxu0 %v1235
        %1458 = vmatprep.subr.bf16.mxu0 %v1238
        %1459 = vmatpush1.bf16.msra.mxu0 %v1237
        %1460 = vmatprep.subr.bf16.mxu0 %v1240
        %1461 = vmatpush1.bf16.msra.mxu0 %v1239
        %1462 = vmatprep.subr.bf16.mxu0 %v1242
        %1463 = vmatpush1.bf16.msra.mxu0 %v1241
        %1464 = vmatprep.subr.bf16.mxu0 %v1244
        %1465 = vmatpush1.bf16.msra.mxu0 %v1243
        %1466 = vmatprep.subr.bf16.mxu0 %v1246
        %1467 = vmatpush1.bf16.msra.mxu0 %v1245
        %1468 = vmatprep.subr.bf16.mxu0 %v1248
        %1469 = vmatpush1.bf16.msra.mxu0 %v1247
        %1470 = vmatprep.subr.bf16.mxu0 %v1250
        %1471 = vmatpush1.bf16.msra.mxu0 %v1249
        %1472 = vmatprep.subr.bf16.mxu0 %v1252
        %1473 = vmatpush1.bf16.msra.mxu0 %v1251
        %1474 = vmatprep.subr.bf16.mxu0 %v1254
        %1475 = vmatpush1.bf16.msra.mxu0 %v1253
        %1476 = vmatprep.subr.bf16.mxu0 %v1256
        %1477 = vmatpush1.bf16.msra.mxu0 %v1255
        %1478 = vmatprep.subr.bf16.mxu0 %v1258
        %1479 = vmatpush1.bf16.msra.mxu0 %v1257
        %1480 = vmatprep.subr.bf16.mxu0 %v1260
        %1481 = vmatpush1.bf16.msra.mxu0 %v1259
        %1482 = vmatprep.mubr.bf16.mxu0 %v756
        %1483 = vmatmul.mubr.bf16.gmra.mrb[0].mxu0 %v853
        %v1484 = vpop.f32.mrb[0].mxu0
        %v1485 = vadd.f32 %v1392, %v1484
        %v1486 = vpop.f32.mrb[0].mxu0
        %v1487 = vadd.f32 %v1394, %v1486
        %v1488 = vpop.f32.mrb[0].mxu0
        %v1489 = vadd.f32 %v1396, %v1488
        %v1490 = vpop.f32.mrb[0].mxu0
        %v1491 = vadd.f32 %v1398, %v1490
        %1492 = vmatprep.mubr.bf16.mxu0 %v757
        %1493 = vmatmul.mubr.bf16.gmra.mrb[0].mxu0 %v854
        %v1494 = vpop.f32.mrb[0].mxu0
        %v1495 = vadd.f32 %v1402, %v1494
        %v1496 = vpop.f32.mrb[0].mxu0
        %v1497 = vadd.f32 %v1404, %v1496
        %v1498 = vpop.f32.mrb[0].mxu0
        %v1499 = vadd.f32 %v1406, %v1498
        %v1500 = vpop.f32.mrb[0].mxu0
        %v1501 = vadd.f32 %v1408, %v1500
        %1502 = vmatprep.mubr.bf16.mxu0 %v758
        %1503 = vmatmul.mubr.bf16.gmra.mrb[0].mxu0 %v855
        %v1504 = vpop.f32.mrb[0].mxu0
        %v1505 = vadd.f32 %v1412, %v1504
        %v1506 = vpop.f32.mrb[0].mxu0
        %v1507 = vadd.f32 %v1414, %v1506
        %v1508 = vpop.f32.mrb[0].mxu0
        %v1509 = vadd.f32 %v1416, %v1508
        %v1510 = vpop.f32.mrb[0].mxu0
        %v1511 = vadd.f32 %v1418, %v1510
        %1512 = vmatprep.mubr.bf16.mxu0 %v759
        %1513 = vmatmul.mubr.bf16.gmra.mrb[0].mxu0 %v856
        %v1514 = vpop.f32.mrb[0].mxu0
        %v1515 = vadd.f32 %v1422, %v1514
        %v1516 = vpop.f32.mrb[0].mxu0
        %v1517 = vadd.f32 %v1424, %v1516
        %v1518 = vpop.f32.mrb[0].mxu0
        %v1519 = vadd.f32 %v1426, %v1518
        %v1520 = vpop.f32.mrb[0].mxu0
        %v1521 = vadd.f32 %v1428, %v1520
        %1522 = vmatprep.mubr.bf16.mxu0 %v760
        %1523 = vmatmul.mubr.bf16.gmra.mrb[0].mxu0 %v857
        %v1524 = vpop.f32.mrb[0].mxu0
        %v1525 = vadd.f32 %v1432, %v1524
        %v1526 = vpop.f32.mrb[0].mxu0
        %v1527 = vadd.f32 %v1434, %v1526
        %v1528 = vpop.f32.mrb[0].mxu0
        %v1529 = vadd.f32 %v1436, %v1528
        %v1530 = vpop.f32.mrb[0].mxu0
        %v1531 = vadd.f32 %v1438, %v1530
        %1532 = vmatprep.mubr.bf16.mxu0 %v761
        %1533 = vmatmul.mubr.bf16.gmra.mrb[0].mxu0 %v858
        %v1534 = vpop.f32.mrb[0].mxu0
        %v1535 = vadd.f32 %v1442, %v1534
        %v1536 = vpop.f32.mrb[0].mxu0
        %v1537 = vadd.f32 %v1444, %v1536
        %v1538 = vpop.f32.mrb[0].mxu0
        %v1539 = vadd.f32 %v1446, %v1538
        %v1540 = vpop.f32.mrb[0].mxu0
        %v1541 = vadd.f32 %v1448, %v1540
        %1542 = vdwg.mxu0
        %1543 = vmatprep.subr.bf16.mxu0 %v1262
        %1544 = vmatpush1.bf16.msra.mxu0 %v1261
        %1545 = vmatprep.subr.bf16.mxu0 %v1264
        %1546 = vmatpush1.bf16.msra.mxu0 %v1263
        %1547 = vmatprep.subr.bf16.mxu0 %v1266
        %1548 = vmatpush1.bf16.msra.mxu0 %v1265
        %1549 = vmatprep.subr.bf16.mxu0 %v1268
        %1550 = vmatpush1.bf16.msra.mxu0 %v1267
        %1551 = vmatprep.subr.bf16.mxu0 %v1270
        %1552 = vmatpush1.bf16.msra.mxu0 %v1269
        %1553 = vmatprep.subr.bf16.mxu0 %v1272
        %1554 = vmatpush1.bf16.msra.mxu0 %v1271
        %1555 = vmatprep.subr.bf16.mxu0 %v1274
        %1556 = vmatpush1.bf16.msra.mxu0 %v1273
        %1557 = vmatprep.subr.bf16.mxu0 %v1276
        %1558 = vmatpush1.bf16.msra.mxu0 %v1275
        %1559 = vmatprep.subr.bf16.mxu0 0
        %1560 = vmatpush1.bf16.msra.mxu0 0
        %1561 = vmatprep.subr.bf16.mxu0 0
        %1562 = vmatpush1.bf16.msra.mxu0 0
        %1563 = vmatprep.subr.bf16.mxu0 0
        %1564 = vmatpush1.bf16.msra.mxu0 0
        %1565 = vmatprep.subr.bf16.mxu0 0
        %1566 = vmatpush1.bf16.msra.mxu0 0
        %1567 = vmatprep.subr.bf16.mxu0 0
        %1568 = vmatpush1.bf16.msra.mxu0 0
        %1569 = vmatprep.subr.bf16.mxu0 0
        %1570 = vmatpush1.bf16.msra.mxu0 0
        %1571 = vmatprep.subr.bf16.mxu0 0
        %1572 = vmatpush1.bf16.msra.mxu0 0
        %1573 = vmatprep.subr.bf16.mxu0 0
        %1574 = vmatpush1.bf16.msra.mxu0 0
        %1575 = vmatprep.mubr.bf16.mxu0 0
        %1576 = vmatmul.mubr.bf16.gmra.mrb[0].mxu0 %v823
        %v1577 = vpop.f32.mrb[0].mxu0
        %v1578 = vadd.f32 %v1485, %v1577
        %v1579 = vpop.f32.mrb[0].mxu0
        %v1580 = vadd.f32 %v1487, %v1579
        %v1581 = vpop.f32.mrb[0].mxu0
        %v1582 = vadd.f32 %v1489, %v1581
        %v1583 = vpop.f32.mrb[0].mxu0
        %v1584 = vadd.f32 %v1491, %v1583
        %1585 = vmatprep.mubr.bf16.mxu0 0
        %1586 = vmatmul.mubr.bf16.gmra.mrb[0].mxu0 %v824
        %v1587 = vpop.f32.mrb[0].mxu0
        %v1588 = vadd.f32 %v1495, %v1587
        %v1589 = vpop.f32.mrb[0].mxu0
        %v1590 = vadd.f32 %v1497, %v1589
        %v1591 = vpop.f32.mrb[0].mxu0
        %v1592 = vadd.f32 %v1499, %v1591
        %v1593 = vpop.f32.mrb[0].mxu0
        %v1594 = vadd.f32 %v1501, %v1593
        %1595 = vmatprep.mubr.bf16.mxu0 0
        %1596 = vmatmul.mubr.bf16.gmra.mrb[0].mxu0 %v825
        %v1597 = vpop.f32.mrb[0].mxu0
        %v1598 = vadd.f32 %v1505, %v1597
        %v1599 = vpop.f32.mrb[0].mxu0
        %v1600 = vadd.f32 %v1507, %v1599
        %v1601 = vpop.f32.mrb[0].mxu0
        %v1602 = vadd.f32 %v1509, %v1601
        %v1603 = vpop.f32.mrb[0].mxu0
        %v1604 = vadd.f32 %v1511, %v1603
        %1605 = vmatprep.mubr.bf16.mxu0 0
        %1606 = vmatmul.mubr.bf16.gmra.mrb[0].mxu0 %v826
        %v1607 = vpop.f32.mrb[0].mxu0
        %v1608 = vadd.f32 %v1515, %v1607
        %v1609 = vpop.f32.mrb[0].mxu0
        %v1610 = vadd.f32 %v1517, %v1609
        %v1611 = vpop.f32.mrb[0].mxu0
        %v1612 = vadd.f32 %v1519, %v1611
        %v1613 = vpop.f32.mrb[0].mxu0
        %v1614 = vadd.f32 %v1521, %v1613
        %1615 = vmatprep.mubr.bf16.mxu0 0
        %1616 = vmatmul.mubr.bf16.gmra.mrb[0].mxu0 %v827
        %v1617 = vpop.f32.mrb[0].mxu0
        %v1618 = vadd.f32 %v1525, %v1617
        %v1619 = vpop.f32.mrb[0].mxu0
        %v1620 = vadd.f32 %v1527, %v1619
        %v1621 = vpop.f32.mrb[0].mxu0
        %v1622 = vadd.f32 %v1529, %v1621
        %v1623 = vpop.f32.mrb[0].mxu0
        %v1624 = vadd.f32 %v1531, %v1623
        %1625 = vmatprep.mubr.bf16.mxu0 0
        %1626 = vmatmul.mubr.bf16.gmra.mrb[0].mxu0 %v828
        %v1627 = vpop.f32.mrb[0].mxu0
        %v1628 = vadd.f32 %v1535, %v1627
        %v1629 = vpop.f32.mrb[0].mxu0
        %v1630 = vadd.f32 %v1537, %v1629
        %v1631 = vpop.f32.mrb[0].mxu0
        %v1632 = vadd.f32 %v1539, %v1631
        %v1633 = vpop.f32.mrb[0].mxu0
        %v1634 = vadd.f32 %v1541, %v1633
        %1635 = vdwg.mxu0
        %v1636 = vld [vmem:[%s3] sm:$0x1]
        %v1637 = vld [vmem:[%s4] sm:$0x1]
        %1638 = vadd.xlane.f32.xlu0 %v1578
        %v1639 = vpop.xlane.xlu0 %1638
        %1640 = vadd.xlane.f32.xlu0 %v1582
        %v1641 = vpop.xlane.xlu0 %1640
        %1642 = vadd.xlane.f32.xlu0 %v1588
        %v1643 = vpop.xlane.xlu0 %1642
        %1644 = vadd.xlane.f32.xlu0 %v1592
        %v1645 = vpop.xlane.xlu0 %1644
        %1646 = vadd.xlane.f32.xlu0 %v1598
        %v1647 = vpop.xlane.xlu0 %1646
        %1648 = vadd.xlane.f32.xlu0 %v1602
        %v1649 = vpop.xlane.xlu0 %1648
        %1650 = vadd.xlane.f32.xlu0 %v1608
        %v1651 = vpop.xlane.xlu0 %1650
        %1652 = vadd.xlane.f32.xlu0 %v1612
        %v1653 = vpop.xlane.xlu0 %1652
        %1654 = vadd.xlane.f32.xlu0 %v1618
        %v1655 = vpop.xlane.xlu0 %1654
        %1656 = vadd.xlane.f32.xlu0 %v1622
        %v1657 = vpop.xlane.xlu0 %1656
        %1658 = vadd.xlane.f32.xlu0 %v1628
        %v1659 = vpop.xlane.xlu0 %1658
        %1660 = vadd.xlane.f32.xlu0 %v1632
        %v1661 = vpop.xlane.xlu0 %1660
        %v1662 = vrcp.pop 128.0
        %v1663 = vmul.f32 %v1639, %v1662
        %v1664 = vmul.f32 %v1641, %v1662
        %v1665 = vmul.f32 %v1643, %v1662
        %v1666 = vmul.f32 %v1645, %v1662
        %v1667 = vmul.f32 %v1647, %v1662
        %v1668 = vmul.f32 %v1649, %v1662
        %v1669 = vmul.f32 %v1651, %v1662
        %v1670 = vmul.f32 %v1653, %v1662
        %v1671 = vmul.f32 %v1655, %v1662
        %v1672 = vmul.f32 %v1657, %v1662
        %v1673 = vmul.f32 %v1659, %v1662
        %v1674 = vmul.f32 %v1661, %v1662
        %v1675 = vsub.f32 %v1578, %v1663
        %v1676 = vsub.f32 %v1582, %v1664
        %v1677 = vsub.f32 %v1588, %v1665
        %v1678 = vsub.f32 %v1592, %v1666
        %v1679 = vsub.f32 %v1598, %v1667
        %v1680 = vsub.f32 %v1602, %v1668
        %v1681 = vsub.f32 %v1608, %v1669
        %v1682 = vsub.f32 %v1612, %v1670
        %v1683 = vsub.f32 %v1618, %v1671
        %v1684 = vsub.f32 %v1622, %v1672
        %v1685 = vsub.f32 %v1628, %v1673
        %v1686 = vsub.f32 %v1632, %v1674
        %v1687 = vmul.f32 %v1675, %v1675
        %v1688 = vmul.f32 %v1676, %v1676
        %v1689 = vmul.f32 %v1677, %v1677
        %v1690 = vmul.f32 %v1678, %v1678
        %v1691 = vmul.f32 %v1679, %v1679
        %v1692 = vmul.f32 %v1680, %v1680
        %v1693 = vmul.f32 %v1681, %v1681
        %v1694 = vmul.f32 %v1682, %v1682
        %v1695 = vmul.f32 %v1683, %v1683
        %v1696 = vmul.f32 %v1684, %v1684
        %v1697 = vmul.f32 %v1685, %v1685
        %v1698 = vmul.f32 %v1686, %v1686
        %1699 = vadd.xlane.f32.xlu0 %v1687
        %v1700 = vpop.xlane.xlu0 %1699
        %1701 = vadd.xlane.f32.xlu0 %v1688
        %v1702 = vpop.xlane.xlu0 %1701
        %1703 = vadd.xlane.f32.xlu0 %v1689
        %v1704 = vpop.xlane.xlu0 %1703
        %1705 = vadd.xlane.f32.xlu0 %v1690
        %v1706 = vpop.xlane.xlu0 %1705
        %1707 = vadd.xlane.f32.xlu0 %v1691
        %v1708 = vpop.xlane.xlu0 %1707
        %1709 = vadd.xlane.f32.xlu0 %v1692
        %v1710 = vpop.xlane.xlu0 %1709
        %1711 = vadd.xlane.f32.xlu0 %v1693
        %v1712 = vpop.xlane.xlu0 %1711
        %1713 = vadd.xlane.f32.xlu0 %v1694
        %v1714 = vpop.xlane.xlu0 %1713
        %1715 = vadd.xlane.f32.xlu0 %v1695
        %v1716 = vpop.xlane.xlu0 %1715
        %1717 = vadd.xlane.f32.xlu0 %v1696
        %v1718 = vpop.xlane.xlu0 %1717
        %1719 = vadd.xlane.f32.xlu0 %v1697
        %v1720 = vpop.xlane.xlu0 %1719
        %1721 = vadd.xlane.f32.xlu0 %v1698
        %v1722 = vpop.xlane.xlu0 %1721
        %v1723 = vmul.f32 %v1700, %v1662
        %v1724 = vmul.f32 %v1702, %v1662
        %v1725 = vmul.f32 %v1704, %v1662
        %v1726 = vmul.f32 %v1706, %v1662
        %v1727 = vmul.f32 %v1708, %v1662
        %v1728 = vmul.f32 %v1710, %v1662
        %v1729 = vmul.f32 %v1712, %v1662
        %v1730 = vmul.f32 %v1714, %v1662
        %v1731 = vmul.f32 %v1716, %v1662
        %v1732 = vmul.f32 %v1718, %v1662
        %v1733 = vmul.f32 %v1720, %v1662
        %v1734 = vmul.f32 %v1722, %v1662
        %v1735 = vadd.f32 %v1723, 1e-05
        %v1736 = vadd.f32 %v1724, 1e-05
        %v1737 = vadd.f32 %v1725, 1e-05
        %v1738 = vadd.f32 %v1726, 1e-05
        %v1739 = vadd.f32 %v1727, 1e-05
        %v1740 = vadd.f32 %v1728, 1e-05
        %v1741 = vadd.f32 %v1729, 1e-05
        %v1742 = vadd.f32 %v1730, 1e-05
        %v1743 = vadd.f32 %v1731, 1e-05
        %v1744 = vadd.f32 %v1732, 1e-05
        %v1745 = vadd.f32 %v1733, 1e-05
        %v1746 = vadd.f32 %v1734, 1e-05
        %v1747 = vrsqrt.pop %v1735
        %v1748 = vrsqrt.pop %v1736
        %v1749 = vrsqrt.pop %v1737
        %v1750 = vrsqrt.pop %v1738
        %v1751 = vrsqrt.pop %v1739
        %v1752 = vrsqrt.pop %v1740
        %v1753 = vrsqrt.pop %v1741
        %v1754 = vrsqrt.pop %v1742
        %v1755 = vrsqrt.pop %v1743
        %v1756 = vrsqrt.pop %v1744
        %v1757 = vrsqrt.pop %v1745
        %v1758 = vrsqrt.pop %v1746
        %v1759 = vmul.f32 %v1675, %v1747
        %v1760 = vmul.f32 %v1676, %v1748
        %v1761 = vmul.f32 %v1677, %v1749
        %v1762 = vmul.f32 %v1678, %v1750
        %v1763 = vmul.f32 %v1679, %v1751
        %v1764 = vmul.f32 %v1680, %v1752
        %v1765 = vmul.f32 %v1681, %v1753
        %v1766 = vmul.f32 %v1682, %v1754
        %v1767 = vmul.f32 %v1683, %v1755
        %v1768 = vmul.f32 %v1684, %v1756
        %v1769 = vmul.f32 %v1685, %v1757
        %v1770 = vmul.f32 %v1686, %v1758
        %v1772 = vlaneseq
        %v1773 = vshrl.u32 %v1772, 7
        %v1774 = vsub.s32 0, %v1773
        %v1775 = vrot.slane %v1636, %v1774
        %v1777 = vmul.f32 %v1759, %v1775
        %v1778 = vmul.f32 %v1760, %v1775
        %v1779 = vmul.f32 %v1761, %v1775
        %v1780 = vmul.f32 %v1762, %v1775
        %v1781 = vmul.f32 %v1763, %v1775
        %v1782 = vmul.f32 %v1764, %v1775
        %v1783 = vmul.f32 %v1765, %v1775
        %v1784 = vmul.f32 %v1766, %v1775
        %v1785 = vmul.f32 %v1767, %v1775
        %v1786 = vmul.f32 %v1768, %v1775
        %v1787 = vmul.f32 %v1769, %v1775
        %v1788 = vmul.f32 %v1770, %v1775
        %v1790 = vlaneseq
        %v1791 = vshrl.u32 %v1790, 7
        %v1792 = vsub.s32 0, %v1791
        %v1793 = vrot.slane %v1637, %v1792
        %v1795 = vadd.f32 %v1777, %v1793
        %v1796 = vadd.f32 %v1778, %v1793
        %v1797 = vadd.f32 %v1779, %v1793
        %v1798 = vadd.f32 %v1780, %v1793
        %v1799 = vadd.f32 %v1781, %v1793
        %v1800 = vadd.f32 %v1782, %v1793
        %v1801 = vadd.f32 %v1783, %v1793
        %v1802 = vadd.f32 %v1784, %v1793
        %v1803 = vadd.f32 %v1785, %v1793
        %v1804 = vadd.f32 %v1786, %v1793
        %v1805 = vadd.f32 %v1787, %v1793
        %v1806 = vadd.f32 %v1788, %v1793
        %v1807 = vmax.f32 %v1795, 0.0
        %v1808 = vmax.f32 %v1796, 0.0
        %v1809 = vmax.f32 %v1797, 0.0
        %v1810 = vmax.f32 %v1798, 0.0
        %v1811 = vmax.f32 %v1799, 0.0
        %v1812 = vmax.f32 %v1800, 0.0
        %v1813 = vmax.f32 %v1801, 0.0
        %v1814 = vmax.f32 %v1802, 0.0
        %v1815 = vmax.f32 %v1803, 0.0
        %v1816 = vmax.f32 %v1804, 0.0
        %v1817 = vmax.f32 %v1805, 0.0
        %v1818 = vmax.f32 %v1806, 0.0
        %v1819 = vrot.slane %v1807, 6
        %v1820 = vrot.slane %v1808, 6
        %v1821 = vrot.slane %v1809, 6
        %v1822 = vrot.slane %v1810, 6
        %v1823 = vrot.slane %v1811, 6
        %v1824 = vrot.slane %v1812, 6
        %v1825 = vrot.slane %v1813, 6
        %v1826 = vrot.slane %v1814, 6
        %v1827 = vrot.slane %v1815, 6
        %v1828 = vrot.slane %v1816, 6
        %v1829 = vrot.slane %v1817, 6
        %v1830 = vrot.slane %v1818, 6
        %v1831 = vsel %vm573, %v1829, %v1830
        %v1832 = vsel %vm573, %v1828, %v1829
        %v1833 = vsel %vm573, %v1827, %v1828
        %v1834 = vsel %vm573, %v1826, %v1827
        %v1835 = vsel %vm573, %v1825, %v1826
        %v1836 = vsel %vm573, %v1824, %v1825
        %v1837 = vsel %vm573, %v1823, %v1824
        %v1838 = vsel %vm573, %v1822, %v1823
        %v1839 = vsel %vm573, %v1821, %v1822
        %v1840 = vsel %vm573, %v1820, %v1821
        %v1841 = vsel %vm573, %v1819, %v1820
        %v1842 = vsel %vm573, %v1830, %v1819
        %v1843 = vsel %vm598, %v1842, 0.0
        %v1844 = vsel %vm599, %v1841, 0.0
        %v1845 = vsel %vm600, %v1840, 0.0
        %v1846 = vsel %vm601, %v1839, 0.0
        %v1847 = vsel %vm602, %v1838, 0.0
        %v1848 = vsel %vm603, %v1837, 0.0
        %v1849 = vsel %vm604, %v1836, 0.0
        %v1850 = vsel %vm605, %v1835, 0.0
        %v1851 = vsel %vm606, %v1834, 0.0
        %v1852 = vsel %vm607, %v1833, 0.0
        %v1853 = vsel %vm608, %v1832, 0.0
        %v1854 = vsel %vm609, %v1831, 0.0
        %v1855 = vpack.c.bf16 %v1844, %v1843
        %v1856 = vpack.c.bf16 %v1846, %v1845
        %v1857 = vpack.c.bf16 %v1848, %v1847
        %v1858 = vpack.c.bf16 %v1850, %v1849
        %v1859 = vpack.c.bf16 %v1852, %v1851
        %v1860 = vpack.c.bf16 %v1854, %v1853
        %v1861 = vrot.slane %v1807, 7
        %v1862 = vrot.slane %v1808, 7
        %v1863 = vrot.slane %v1809, 7
        %v1864 = vrot.slane %v1810, 7
        %v1865 = vrot.slane %v1811, 7
        %v1866 = vrot.slane %v1812, 7
        %v1867 = vrot.slane %v1813, 7
        %v1868 = vrot.slane %v1814, 7
        %v1869 = vrot.slane %v1815, 7
        %v1870 = vrot.slane %v1816, 7
        %v1871 = vrot.slane %v1817, 7
        %v1872 = vrot.slane %v1818, 7
        %v1873 = vsel %vm640, %v1871, %v1872
        %v1874 = vsel %vm640, %v1870, %v1871
        %v1875 = vsel %vm640, %v1869, %v1870
        %v1876 = vsel %vm640, %v1868, %v1869
        %v1877 = vsel %vm640, %v1867, %v1868
        %v1878 = vsel %vm640, %v1866, %v1867
        %v1879 = vsel %vm640, %v1865, %v1866
        %v1880 = vsel %vm640, %v1864, %v1865
        %v1881 = vsel %vm640, %v1863, %v1864
        %v1882 = vsel %vm640, %v1862, %v1863
        %v1883 = vsel %vm640, %v1861, %v1862
        %v1884 = vsel %vm640, %v1872, %v1861
        %v1885 = vsel %vm665, %v1884, 0.0
        %v1886 = vsel %vm666, %v1883, 0.0
        %v1887 = vsel %vm667, %v1882, 0.0
        %v1888 = vsel %vm668, %v1881, 0.0
        %v1889 = vsel %vm669, %v1880, 0.0
        %v1890 = vsel %vm670, %v1879, 0.0
        %v1891 = vsel %vm671, %v1878, 0.0
        %v1892 = vsel %vm672, %v1877, 0.0
        %v1893 = vsel %vm673, %v1876, 0.0
        %v1894 = vsel %vm674, %v1875, 0.0
        %v1895 = vsel %vm675, %v1874, 0.0
        %v1896 = vsel %vm676, %v1873, 0.0
        %v1897 = vpack.c.bf16 %v1886, %v1885
        %v1898 = vpack.c.bf16 %v1888, %v1887
        %v1899 = vpack.c.bf16 %v1890, %v1889
        %v1900 = vpack.c.bf16 %v1892, %v1891
        %v1901 = vpack.c.bf16 %v1894, %v1893
        %v1902 = vpack.c.bf16 %v1896, %v1895
        %v1903 = vpack.c.bf16 %v1808, %v1807
        %v1904 = vpack.c.bf16 %v1810, %v1809
        %v1905 = vpack.c.bf16 %v1812, %v1811
        %v1906 = vpack.c.bf16 %v1814, %v1813
        %v1907 = vpack.c.bf16 %v1816, %v1815
        %v1908 = vpack.c.bf16 %v1818, %v1817
        %v1909 = vrot.slane %v1807, 1
        %v1910 = vrot.slane %v1808, 1
        %v1911 = vrot.slane %v1809, 1
        %v1912 = vrot.slane %v1810, 1
        %v1913 = vrot.slane %v1811, 1
        %v1914 = vrot.slane %v1812, 1
        %v1915 = vrot.slane %v1813, 1
        %v1916 = vrot.slane %v1814, 1
        %v1917 = vrot.slane %v1815, 1
        %v1918 = vrot.slane %v1816, 1
        %v1919 = vrot.slane %v1817, 1
        %v1920 = vrot.slane %v1818, 1
        %v1921 = vsel %vm707, %v1919, %v1920
        %v1922 = vsel %vm707, %v1918, %v1919
        %v1923 = vsel %vm707, %v1917, %v1918
        %v1924 = vsel %vm707, %v1916, %v1917
        %v1925 = vsel %vm707, %v1915, %v1916
        %v1926 = vsel %vm707, %v1914, %v1915
        %v1927 = vsel %vm707, %v1913, %v1914
        %v1928 = vsel %vm707, %v1912, %v1913
        %v1929 = vsel %vm707, %v1911, %v1912
        %v1930 = vsel %vm707, %v1910, %v1911
        %v1931 = vsel %vm707, %v1909, %v1910
        %v1932 = vsel %vm707, %v1920, %v1909
        %v1933 = vsel %vm732, %v1931, 0.0
        %v1934 = vsel %vm733, %v1930, 0.0
        %v1935 = vsel %vm734, %v1929, 0.0
        %v1936 = vsel %vm735, %v1928, 0.0
        %v1937 = vsel %vm736, %v1927, 0.0
        %v1938 = vsel %vm737, %v1926, 0.0
        %v1939 = vsel %vm738, %v1925, 0.0
        %v1940 = vsel %vm739, %v1924, 0.0
        %v1941 = vsel %vm740, %v1923, 0.0
        %v1942 = vsel %vm741, %v1922, 0.0
        %v1943 = vsel %vm742, %v1921, 0.0
        %v1944 = vsel %vm743, %v1932, 0.0
        %v1945 = vpack.c.bf16 %v1934, %v1933
        %v1946 = vpack.c.bf16 %v1936, %v1935
        %v1947 = vpack.c.bf16 %v1938, %v1937
        %v1948 = vpack.c.bf16 %v1940, %v1939
        %v1949 = vpack.c.bf16 %v1942, %v1941
        %v1950 = vpack.c.bf16 %v1944, %v1943
        %v1951 = vrot.slane %v1807, 2
        %v1952 = vrot.slane %v1808, 2
        %v1953 = vrot.slane %v1809, 2
        %v1954 = vrot.slane %v1810, 2
        %v1955 = vrot.slane %v1811, 2
        %v1956 = vrot.slane %v1812, 2
        %v1957 = vrot.slane %v1813, 2
        %v1958 = vrot.slane %v1814, 2
        %v1959 = vrot.slane %v1815, 2
        %v1960 = vrot.slane %v1816, 2
        %v1961 = vrot.slane %v1817, 2
        %v1962 = vrot.slane %v1818, 2
        %v1963 = vsel %vm774, %v1961, %v1962
        %v1964 = vsel %vm774, %v1960, %v1961
        %v1965 = vsel %vm774, %v1959, %v1960
        %v1966 = vsel %vm774, %v1958, %v1959
        %v1967 = vsel %vm774, %v1957, %v1958
        %v1968 = vsel %vm774, %v1956, %v1957
        %v1969 = vsel %vm774, %v1955, %v1956
        %v1970 = vsel %vm774, %v1954, %v1955
        %v1971 = vsel %vm774, %v1953, %v1954
        %v1972 = vsel %vm774, %v1952, %v1953
        %v1973 = vsel %vm774, %v1951, %v1952
        %v1974 = vsel %vm774, %v1962, %v1951
        %v1975 = vsel %vm799, %v1973, 0.0
        %v1976 = vsel %vm800, %v1972, 0.0
        %v1977 = vsel %vm801, %v1971, 0.0
        %v1978 = vsel %vm802, %v1970, 0.0
        %v1979 = vsel %vm803, %v1969, 0.0
        %v1980 = vsel %vm804, %v1968, 0.0
        %v1981 = vsel %vm805, %v1967, 0.0
        %v1982 = vsel %vm806, %v1966, 0.0
        %v1983 = vsel %vm807, %v1965, 0.0
        %v1984 = vsel %vm808, %v1964, 0.0
        %v1985 = vsel %vm809, %v1963, 0.0
        %v1986 = vsel %vm810, %v1974, 0.0
        %v1987 = vpack.c.bf16 %v1976, %v1975
        %v1988 = vpack.c.bf16 %v1978, %v1977
        %v1989 = vpack.c.bf16 %v1980, %v1979
        %v1990 = vpack.c.bf16 %v1982, %v1981
        %v1991 = vpack.c.bf16 %v1984, %v1983
        %v1992 = vpack.c.bf16 %v1986, %v1985
        %v1993 = vld [vmem:[%s5] sm:$0xf]
        %v1994 = vld [vmem:[%s5 + $0x4] sm:$0xf]
        %v1995 = vld [vmem:[%s5 + $0x8] sm:$0xf]
        %v1996 = vld [vmem:[%s5 + $0xc] sm:$0xf]
        %v1997 = vld [vmem:[%s5 + $0x10] sm:$0xf]
        %v1998 = vld [vmem:[%s5 + $0x14] sm:$0xf]
        %v1999 = vld [vmem:[%s5 + $0x18] sm:$0xf]
        %v2000 = vld [vmem:[%s5 + $0x1c] sm:$0xf]
        %v2001 = vld [vmem:[%s5 + $0x20] sm:$0xf]
        %v2002 = vld [vmem:[%s5 + $0x24] sm:$0xf]
        %v2003 = vld [vmem:[%s5 + $0x28] sm:$0xf]
        %v2004 = vld [vmem:[%s5 + $0x2c] sm:$0xf]
        %v2005 = vld [vmem:[%s5 + $0x30] sm:$0xf]
        %v2006 = vld [vmem:[%s5 + $0x34] sm:$0xf]
        %v2007 = vld [vmem:[%s5 + $0x38] sm:$0xf]
        %v2008 = vld [vmem:[%s5 + $0x3c] sm:$0xf]
        %v2009 = vld [vmem:[%s5 + $0x40] sm:$0xf]
        %v2010 = vld [vmem:[%s5 + $0x44] sm:$0xf]
        %v2011 = vld [vmem:[%s5 + $0x48] sm:$0xf]
        %v2012 = vld [vmem:[%s5 + $0x4c] sm:$0xf]
        %v2013 = vld [vmem:[%s5 + $0x50] sm:$0xf]
        %v2014 = vld [vmem:[%s5 + $0x54] sm:$0xf]
        %v2015 = vld [vmem:[%s5 + $0x58] sm:$0xf]
        %v2016 = vld [vmem:[%s5 + $0x5c] sm:$0xf]
        %v2017 = vld [vmem:[%s5 + $0x60] sm:$0xf]
        %v2018 = vld [vmem:[%s5 + $0x64] sm:$0xf]
        %v2019 = vld [vmem:[%s5 + $0x68] sm:$0xf]
        %v2020 = vld [vmem:[%s5 + $0x6c] sm:$0xf]
        %v2021 = vld [vmem:[%s5 + $0x70] sm:$0xf]
        %v2022 = vld [vmem:[%s5 + $0x74] sm:$0xf]
        %v2023 = vld [vmem:[%s5 + $0x78] sm:$0xf]
        %v2024 = vld [vmem:[%s5 + $0x7c] sm:$0xf]
        %v2025 = vld [vmem:[%s5 + $0x80] sm:$0xf]
        %v2026 = vld [vmem:[%s5 + $0x84] sm:$0xf]
        %v2027 = vld [vmem:[%s5 + $0x88] sm:$0xf]
        %v2028 = vld [vmem:[%s5 + $0x8c] sm:$0xf]
        %v2029 = vld [vmem:[%s5 + $0x90] sm:$0xf]
        %v2030 = vld [vmem:[%s5 + $0x94] sm:$0xf]
        %v2031 = vld [vmem:[%s5 + $0x98] sm:$0xf]
        %v2032 = vld [vmem:[%s5 + $0x9c] sm:$0xf]
        %v2033 = vld [vmem:[%s5 + $0xa0] sm:$0xf]
        %v2034 = vld [vmem:[%s5 + $0xa4] sm:$0xf]
        %v2035 = vld [vmem:[%s5 + $0xa8] sm:$0xf]
        %v2036 = vld [vmem:[%s5 + $0xac] sm:$0xf]
        %v2037 = vld [vmem:[%s5 + $0xb0] sm:$0xf]
        %v2038 = vld [vmem:[%s5 + $0xb4] sm:$0xf]
        %v2039 = vld [vmem:[%s5 + $0xb8] sm:$0xf]
        %v2040 = vld [vmem:[%s5 + $0xbc] sm:$0xf]
        %v2041 = vld [vmem:[%s5 + $0xc0] sm:$0xf]
        %v2042 = vld [vmem:[%s5 + $0xc4] sm:$0xf]
        %v2043 = vld [vmem:[%s5 + $0xc8] sm:$0xf]
        %v2044 = vld [vmem:[%s5 + $0xcc] sm:$0xf]
        %v2045 = vld [vmem:[%s5 + $0xd0] sm:$0xf]
        %v2046 = vld [vmem:[%s5 + $0xd4] sm:$0xf]
        %v2047 = vld [vmem:[%s5 + $0xd8] sm:$0xf]
        %v2048 = vld [vmem:[%s5 + $0xdc] sm:$0xf]
        %v2049 = vld [vmem:[%s5 + $0xe0] sm:$0xf]
        %v2050 = vld [vmem:[%s5 + $0xe4] sm:$0xf]
        %v2051 = vld [vmem:[%s5 + $0xe8] sm:$0xf]
        %v2052 = vld [vmem:[%s5 + $0xec] sm:$0xf]
        %v2053 = vld [vmem:[%s5 + $0xf0] sm:$0xf]
        %v2054 = vld [vmem:[%s5 + $0xf4] sm:$0xf]
        %v2055 = vld [vmem:[%s5 + $0xf8] sm:$0xf]
        %v2056 = vld [vmem:[%s5 + $0xfc] sm:$0xf]
        %v2057 = vld [vmem:[%s5 + $0x100] sm:$0xf]
        %v2058 = vld [vmem:[%s5 + $0x104] sm:$0xf]
        %v2059 = vld [vmem:[%s5 + $0x108] sm:$0xf]
        %v2060 = vld [vmem:[%s5 + $0x10c] sm:$0xf]
        %v2061 = vld [vmem:[%s5 + $0x110] sm:$0xf]
        %v2062 = vld [vmem:[%s5 + $0x114] sm:$0xf]
        %v2063 = vld [vmem:[%s5 + $0x118] sm:$0xf]
        %v2064 = vld [vmem:[%s5 + $0x11c] sm:$0xf]
        %v2065 = vld [vmem:[%s5 + $0x120] sm:$0xf]
        %v2066 = vld [vmem:[%s5 + $0x124] sm:$0xf]
        %v2067 = vld [vmem:[%s5 + $0x128] sm:$0xf]
        %v2068 = vld [vmem:[%s5 + $0x12c] sm:$0xf]
        %v2069 = vld [vmem:[%s5 + $0x130] sm:$0xf]
        %v2070 = vld [vmem:[%s5 + $0x134] sm:$0xf]
        %v2071 = vld [vmem:[%s5 + $0x138] sm:$0xf]
        %v2072 = vld [vmem:[%s5 + $0x13c] sm:$0xf]
        %v2073 = vld [vmem:[%s6] sm:$0x1]
        %v2075 = vlaneseq
        %v2076 = vshrl.u32 %v2075, 7
        %v2077 = vsub.s32 0, %v2076
        %v2078 = vrot.slane %v2073, %v2077
        %v2160 = vunpack.c.l.b16 %v1993
        %v2161 = vunpack.c.l.b16 %v1994
        %v2162 = vunpack.c.l.b16 %v1995
        %v2163 = vunpack.c.l.b16 %v1996
        %v2164 = vunpack.c.l.b16 %v1997
        %v2165 = vunpack.c.l.b16 %v1998
        %v2166 = vunpack.c.l.b16 %v1999
        %v2167 = vunpack.c.l.b16 %v2000
        %v2168 = vunpack.c.l.b16 %v2001
        %v2169 = vunpack.c.l.b16 %v2002
        %v2170 = vunpack.c.l.b16 %v2003
        %v2171 = vunpack.c.l.b16 %v2004
        %v2172 = vunpack.c.l.b16 %v2005
        %v2173 = vunpack.c.l.b16 %v2006
        %v2174 = vunpack.c.l.b16 %v2007
        %v2175 = vunpack.c.l.b16 %v2008
        %v2176 = vunpack.c.l.b16 %v2009
        %v2177 = vunpack.c.l.b16 %v2010
        %v2178 = vunpack.c.l.b16 %v2011
        %v2179 = vunpack.c.l.b16 %v2012
        %v2180 = vunpack.c.l.b16 %v2013
        %v2181 = vunpack.c.l.b16 %v2014
        %v2182 = vunpack.c.l.b16 %v2015
        %v2183 = vunpack.c.l.b16 %v2016
        %v2184 = vunpack.c.l.b16 %v2017
        %v2185 = vunpack.c.l.b16 %v2018
        %v2186 = vunpack.c.l.b16 %v2019
        %v2187 = vunpack.c.l.b16 %v2020
        %v2188 = vunpack.c.l.b16 %v2021
        %v2189 = vunpack.c.l.b16 %v2022
        %v2190 = vunpack.c.l.b16 %v2023
        %v2191 = vunpack.c.l.b16 %v2024
        %v2192 = vunpack.c.l.b16 %v2025
        %v2193 = vunpack.c.l.b16 %v2026
        %v2194 = vunpack.c.l.b16 %v2027
        %v2195 = vunpack.c.l.b16 %v2028
        %v2196 = vunpack.c.l.b16 %v2029
        %v2197 = vunpack.c.l.b16 %v2030
        %v2198 = vunpack.c.l.b16 %v2031
        %v2199 = vunpack.c.l.b16 %v2032
        %v2200 = vunpack.c.l.b16 %v2033
        %v2201 = vunpack.c.l.b16 %v2034
        %v2202 = vunpack.c.l.b16 %v2035
        %v2203 = vunpack.c.l.b16 %v2036
        %v2204 = vunpack.c.l.b16 %v2037
        %v2205 = vunpack.c.l.b16 %v2038
        %v2206 = vunpack.c.l.b16 %v2039
        %v2207 = vunpack.c.l.b16 %v2040
        %v2208 = vunpack.c.l.b16 %v2041
        %v2209 = vunpack.c.l.b16 %v2042
        %v2210 = vunpack.c.l.b16 %v2043
        %v2211 = vunpack.c.l.b16 %v2044
        %v2212 = vunpack.c.l.b16 %v2045
        %v2213 = vunpack.c.l.b16 %v2046
        %v2214 = vunpack.c.l.b16 %v2047
        %v2215 = vunpack.c.l.b16 %v2048
        %v2216 = vunpack.c.l.b16 %v2049
        %v2217 = vunpack.c.l.b16 %v2050
        %v2218 = vunpack.c.l.b16 %v2051
        %v2219 = vunpack.c.l.b16 %v2052
        %v2220 = vunpack.c.l.b16 %v2053
        %v2221 = vunpack.c.l.b16 %v2054
        %v2222 = vunpack.c.l.b16 %v2055
        %v2223 = vunpack.c.l.b16 %v2056
        %v2224 = vunpack.c.l.b16 %v2057
        %v2225 = vunpack.c.l.b16 %v2058
        %v2226 = vunpack.c.l.b16 %v2059
        %v2227 = vunpack.c.l.b16 %v2060
        %v2228 = vunpack.c.l.b16 %v2061
        %v2229 = vunpack.c.l.b16 %v2062
        %v2230 = vunpack.c.l.b16 %v2063
        %v2231 = vunpack.c.l.b16 %v2064
        %v2232 = vunpack.c.l.b16 %v2065
        %v2233 = vunpack.c.l.b16 %v2066
        %v2234 = vunpack.c.l.b16 %v2067
        %v2235 = vunpack.c.l.b16 %v2068
        %v2236 = vunpack.c.l.b16 %v2069
        %v2237 = vunpack.c.l.b16 %v2070
        %v2238 = vunpack.c.l.b16 %v2071
        %v2239 = vunpack.c.l.b16 %v2072
        %v2240 = vpack.c.b16 %v2161, %v2160
        %v2241 = vpack.c.b16 %v2163, %v2162
        %v2242 = vpack.c.b16 %v2165, %v2164
        %v2243 = vpack.c.b16 %v2167, %v2166
        %v2244 = vpack.c.b16 %v2169, %v2168
        %v2245 = vpack.c.b16 %v2171, %v2170
        %v2246 = vpack.c.b16 %v2173, %v2172
        %v2247 = vpack.c.b16 %v2175, %v2174
        %v2248 = vpack.c.b16 %v2177, %v2176
        %v2249 = vpack.c.b16 %v2179, %v2178
        %v2250 = vpack.c.b16 %v2181, %v2180
        %v2251 = vpack.c.b16 %v2183, %v2182
        %v2252 = vpack.c.b16 %v2185, %v2184
        %v2253 = vpack.c.b16 %v2187, %v2186
        %v2254 = vpack.c.b16 %v2189, %v2188
        %v2255 = vpack.c.b16 %v2191, %v2190
        %v2256 = vpack.c.b16 %v2193, %v2192
        %v2257 = vpack.c.b16 %v2195, %v2194
        %v2258 = vpack.c.b16 %v2197, %v2196
        %v2259 = vpack.c.b16 %v2199, %v2198
        %v2260 = vpack.c.b16 %v2201, %v2200
        %v2261 = vpack.c.b16 %v2203, %v2202
        %v2262 = vpack.c.b16 %v2205, %v2204
        %v2263 = vpack.c.b16 %v2207, %v2206
        %v2264 = vpack.c.b16 %v2209, %v2208
        %v2265 = vpack.c.b16 %v2211, %v2210
        %v2266 = vpack.c.b16 %v2213, %v2212
        %v2267 = vpack.c.b16 %v2215, %v2214
        %v2268 = vpack.c.b16 %v2217, %v2216
        %v2269 = vpack.c.b16 %v2219, %v2218
        %v2270 = vpack.c.b16 %v2221, %v2220
        %v2271 = vpack.c.b16 %v2223, %v2222
        %v2272 = vpack.c.b16 %v2225, %v2224
        %v2273 = vpack.c.b16 %v2227, %v2226
        %v2274 = vpack.c.b16 %v2229, %v2228
        %v2275 = vpack.c.b16 %v2231, %v2230
        %v2276 = vpack.c.b16 %v2233, %v2232
        %v2277 = vpack.c.b16 %v2235, %v2234
        %v2278 = vpack.c.b16 %v2237, %v2236
        %v2279 = vpack.c.b16 %v2239, %v2238
        %2320 = vmatprep.subr.bf16.mxu0 0
        %2321 = vmatpush1.bf16.msra.mxu0 %v2240
        %2322 = vmatprep.subr.bf16.mxu0 0
        %2323 = vmatpush1.bf16.msra.mxu0 %v2241
        %2324 = vmatprep.subr.bf16.mxu0 0
        %2325 = vmatpush1.bf16.msra.mxu0 %v2242
        %2326 = vmatprep.subr.bf16.mxu0 0
        %2327 = vmatpush1.bf16.msra.mxu0 %v2243
        %2328 = vmatprep.subr.bf16.mxu0 0
        %2329 = vmatpush1.bf16.msra.mxu0 %v2244
        %2330 = vmatprep.subr.bf16.mxu0 0
        %2331 = vmatpush1.bf16.msra.mxu0 %v2245
        %2332 = vmatprep.subr.bf16.mxu0 0
        %2333 = vmatpush1.bf16.msra.mxu0 %v2246
        %2334 = vmatprep.subr.bf16.mxu0 0
        %2335 = vmatpush1.bf16.msra.mxu0 %v2247
        %2336 = vmatprep.subr.bf16.mxu0 0
        %2337 = vmatpush1.bf16.msra.mxu0 %v2248
        %2338 = vmatprep.subr.bf16.mxu0 0
        %2339 = vmatpush1.bf16.msra.mxu0 %v2249
        %2340 = vmatprep.subr.bf16.mxu0 0
        %2341 = vmatpush1.bf16.msra.mxu0 %v2250
        %2342 = vmatprep.subr.bf16.mxu0 0
        %2343 = vmatpush1.bf16.msra.mxu0 %v2251
        %2344 = vmatprep.subr.bf16.mxu0 0
        %2345 = vmatpush1.bf16.msra.mxu0 %v2252
        %2346 = vmatprep.subr.bf16.mxu0 0
        %2347 = vmatpush1.bf16.msra.mxu0 %v2253
        %2348 = vmatprep.subr.bf16.mxu0 0
        %2349 = vmatpush1.bf16.msra.mxu0 %v2254
        %2350 = vmatprep.subr.bf16.mxu0 0
        %2351 = vmatpush1.bf16.msra.mxu0 %v2255
        %2352 = vmatprep.mubr.bf16.mxu0 %v1897
        %2353 = vmatmul.mubr.bf16.gmra.mrb[0].mxu0 %v1855
        %v2354 = vpop.f32.mrb[0].mxu0
        %v2355 = vadd.f32 %v2078, %v2354
        %v2356 = vpop.f32.mrb[0].mxu0
        %v2357 = vpop.f32.mrb[0].mxu0
        %v2358 = vadd.f32 %v2078, %v2357
        %v2359 = vpop.f32.mrb[0].mxu0
        %2360 = vmatprep.mubr.bf16.mxu0 %v1898
        %2361 = vmatmul.mubr.bf16.gmra.mrb[0].mxu0 %v1856
        %v2362 = vpop.f32.mrb[0].mxu0
        %v2363 = vadd.f32 %v2078, %v2362
        %v2364 = vpop.f32.mrb[0].mxu0
        %v2365 = vpop.f32.mrb[0].mxu0
        %v2366 = vadd.f32 %v2078, %v2365
        %v2367 = vpop.f32.mrb[0].mxu0
        %2368 = vmatprep.mubr.bf16.mxu0 %v1899
        %2369 = vmatmul.mubr.bf16.gmra.mrb[0].mxu0 %v1857
        %v2370 = vpop.f32.mrb[0].mxu0
        %v2371 = vadd.f32 %v2078, %v2370
        %v2372 = vpop.f32.mrb[0].mxu0
        %v2373 = vpop.f32.mrb[0].mxu0
        %v2374 = vadd.f32 %v2078, %v2373
        %v2375 = vpop.f32.mrb[0].mxu0
        %2376 = vmatprep.mubr.bf16.mxu0 %v1900
        %2377 = vmatmul.mubr.bf16.gmra.mrb[0].mxu0 %v1858
        %v2378 = vpop.f32.mrb[0].mxu0
        %v2379 = vadd.f32 %v2078, %v2378
        %v2380 = vpop.f32.mrb[0].mxu0
        %v2381 = vpop.f32.mrb[0].mxu0
        %v2382 = vadd.f32 %v2078, %v2381
        %v2383 = vpop.f32.mrb[0].mxu0
        %2384 = vmatprep.mubr.bf16.mxu0 %v1901
        %2385 = vmatmul.mubr.bf16.gmra.mrb[0].mxu0 %v1859
        %v2386 = vpop.f32.mrb[0].mxu0
        %v2387 = vadd.f32 %v2078, %v2386
        %v2388 = vpop.f32.mrb[0].mxu0
        %v2389 = vpop.f32.mrb[0].mxu0
        %v2390 = vadd.f32 %v2078, %v2389
        %v2391 = vpop.f32.mrb[0].mxu0
        %2392 = vmatprep.mubr.bf16.mxu0 %v1902
        %2393 = vmatmul.mubr.bf16.gmra.mrb[0].mxu0 %v1860
        %v2394 = vpop.f32.mrb[0].mxu0
        %v2395 = vadd.f32 %v2078, %v2394
        %v2396 = vpop.f32.mrb[0].mxu0
        %v2397 = vpop.f32.mrb[0].mxu0
        %v2398 = vadd.f32 %v2078, %v2397
        %v2399 = vpop.f32.mrb[0].mxu0
        %2400 = vdwg.mxu0
        %2401 = vmatprep.subr.bf16.mxu0 0
        %2402 = vmatpush1.bf16.msra.mxu0 %v2256
        %2403 = vmatprep.subr.bf16.mxu0 0
        %2404 = vmatpush1.bf16.msra.mxu0 %v2257
        %2405 = vmatprep.subr.bf16.mxu0 0
        %2406 = vmatpush1.bf16.msra.mxu0 %v2258
        %2407 = vmatprep.subr.bf16.mxu0 0
        %2408 = vmatpush1.bf16.msra.mxu0 %v2259
        %2409 = vmatprep.subr.bf16.mxu0 0
        %2410 = vmatpush1.bf16.msra.mxu0 %v2260
        %2411 = vmatprep.subr.bf16.mxu0 0
        %2412 = vmatpush1.bf16.msra.mxu0 %v2261
        %2413 = vmatprep.subr.bf16.mxu0 0
        %2414 = vmatpush1.bf16.msra.mxu0 %v2262
        %2415 = vmatprep.subr.bf16.mxu0 0
        %2416 = vmatpush1.bf16.msra.mxu0 %v2263
        %2417 = vmatprep.subr.bf16.mxu0 0
        %2418 = vmatpush1.bf16.msra.mxu0 %v2264
        %2419 = vmatprep.subr.bf16.mxu0 0
        %2420 = vmatpush1.bf16.msra.mxu0 %v2265
        %2421 = vmatprep.subr.bf16.mxu0 0
        %2422 = vmatpush1.bf16.msra.mxu0 %v2266
        %2423 = vmatprep.subr.bf16.mxu0 0
        %2424 = vmatpush1.bf16.msra.mxu0 %v2267
        %2425 = vmatprep.subr.bf16.mxu0 0
        %2426 = vmatpush1.bf16.msra.mxu0 %v2268
        %2427 = vmatprep.subr.bf16.mxu0 0
        %2428 = vmatpush1.bf16.msra.mxu0 %v2269
        %2429 = vmatprep.subr.bf16.mxu0 0
        %2430 = vmatpush1.bf16.msra.mxu0 %v2270
        %2431 = vmatprep.subr.bf16.mxu0 0
        %2432 = vmatpush1.bf16.msra.mxu0 %v2271
        %2433 = vmatprep.mubr.bf16.mxu0 %v1945
        %2434 = vmatmul.mubr.bf16.gmra.mrb[0].mxu0 %v1903
        %v2435 = vpop.f32.mrb[0].mxu0
        %v2436 = vadd.f32 %v2355, %v2435
        %v2437 = vpop.f32.mrb[0].mxu0
        %v2438 = vpop.f32.mrb[0].mxu0
        %v2439 = vadd.f32 %v2358, %v2438
        %v2440 = vpop.f32.mrb[0].mxu0
        %2441 = vmatprep.mubr.bf16.mxu0 %v1946
        %2442 = vmatmul.mubr.bf16.gmra.mrb[0].mxu0 %v1904
        %v2443 = vpop.f32.mrb[0].mxu0
        %v2444 = vadd.f32 %v2363, %v2443
        %v2445 = vpop.f32.mrb[0].mxu0
        %v2446 = vpop.f32.mrb[0].mxu0
        %v2447 = vadd.f32 %v2366, %v2446
        %v2448 = vpop.f32.mrb[0].mxu0
        %2449 = vmatprep.mubr.bf16.mxu0 %v1947
        %2450 = vmatmul.mubr.bf16.gmra.mrb[0].mxu0 %v1905
        %v2451 = vpop.f32.mrb[0].mxu0
        %v2452 = vadd.f32 %v2371, %v2451
        %v2453 = vpop.f32.mrb[0].mxu0
        %v2454 = vpop.f32.mrb[0].mxu0
        %v2455 = vadd.f32 %v2374, %v2454
        %v2456 = vpop.f32.mrb[0].mxu0
        %2457 = vmatprep.mubr.bf16.mxu0 %v1948
        %2458 = vmatmul.mubr.bf16.gmra.mrb[0].mxu0 %v1906
        %v2459 = vpop.f32.mrb[0].mxu0
        %v2460 = vadd.f32 %v2379, %v2459
        %v2461 = vpop.f32.mrb[0].mxu0
        %v2462 = vpop.f32.mrb[0].mxu0
        %v2463 = vadd.f32 %v2382, %v2462
        %v2464 = vpop.f32.mrb[0].mxu0
        %2465 = vmatprep.mubr.bf16.mxu0 %v1949
        %2466 = vmatmul.mubr.bf16.gmra.mrb[0].mxu0 %v1907
        %v2467 = vpop.f32.mrb[0].mxu0
        %v2468 = vadd.f32 %v2387, %v2467
        %v2469 = vpop.f32.mrb[0].mxu0
        %v2470 = vpop.f32.mrb[0].mxu0
        %v2471 = vadd.f32 %v2390, %v2470
        %v2472 = vpop.f32.mrb[0].mxu0
        %2473 = vmatprep.mubr.bf16.mxu0 %v1950
        %2474 = vmatmul.mubr.bf16.gmra.mrb[0].mxu0 %v1908
        %v2475 = vpop.f32.mrb[0].mxu0
        %v2476 = vadd.f32 %v2395, %v2475
        %v2477 = vpop.f32.mrb[0].mxu0
        %v2478 = vpop.f32.mrb[0].mxu0
        %v2479 = vadd.f32 %v2398, %v2478
        %v2480 = vpop.f32.mrb[0].mxu0
        %2481 = vdwg.mxu0
        %2482 = vmatprep.subr.bf16.mxu0 0
        %2483 = vmatpush1.bf16.msra.mxu0 %v2272
        %2484 = vmatprep.subr.bf16.mxu0 0
        %2485 = vmatpush1.bf16.msra.mxu0 %v2273
        %2486 = vmatprep.subr.bf16.mxu0 0
        %2487 = vmatpush1.bf16.msra.mxu0 %v2274
        %2488 = vmatprep.subr.bf16.mxu0 0
        %2489 = vmatpush1.bf16.msra.mxu0 %v2275
        %2490 = vmatprep.subr.bf16.mxu0 0
        %2491 = vmatpush1.bf16.msra.mxu0 %v2276
        %2492 = vmatprep.subr.bf16.mxu0 0
        %2493 = vmatpush1.bf16.msra.mxu0 %v2277
        %2494 = vmatprep.subr.bf16.mxu0 0
        %2495 = vmatpush1.bf16.msra.mxu0 %v2278
        %2496 = vmatprep.subr.bf16.mxu0 0
        %2497 = vmatpush1.bf16.msra.mxu0 %v2279
        %2498 = vmatprep.subr.bf16.mxu0 0
        %2499 = vmatpush1.bf16.msra.mxu0 0
        %2500 = vmatprep.subr.bf16.mxu0 0
        %2501 = vmatpush1.bf16.msra.mxu0 0
        %2502 = vmatprep.subr.bf16.mxu0 0
        %2503 = vmatpush1.bf16.msra.mxu0 0
        %2504 = vmatprep.subr.bf16.mxu0 0
        %2505 = vmatpush1.bf16.msra.mxu0 0
        %2506 = vmatprep.subr.bf16.mxu0 0
        %2507 = vmatpush1.bf16.msra.mxu0 0
        %2508 = vmatprep.subr.bf16.mxu0 0
        %2509 = vmatpush1.bf16.msra.mxu0 0
        %2510 = vmatprep.subr.bf16.mxu0 0
        %2511 = vmatpush1.bf16.msra.mxu0 0
        %2512 = vmatprep.subr.bf16.mxu0 0
        %2513 = vmatpush1.bf16.msra.mxu0 0
        %2514 = vmatprep.mubr.bf16.mxu0 0
        %2515 = vmatmul.mubr.bf16.gmra.mrb[0].mxu0 %v1987
        %v2516 = vpop.f32.mrb[0].mxu0
        %v2517 = vadd.f32 %v2436, %v2516
        %v2518 = vpop.f32.mrb[0].mxu0
        %v2519 = vpop.f32.mrb[0].mxu0
        %v2520 = vadd.f32 %v2439, %v2519
        %v2521 = vpop.f32.mrb[0].mxu0
        %2522 = vmatprep.mubr.bf16.mxu0 0
        %2523 = vmatmul.mubr.bf16.gmra.mrb[0].mxu0 %v1988
        %v2524 = vpop.f32.mrb[0].mxu0
        %v2525 = vadd.f32 %v2444, %v2524
        %v2526 = vpop.f32.mrb[0].mxu0
        %v2527 = vpop.f32.mrb[0].mxu0
        %v2528 = vadd.f32 %v2447, %v2527
        %v2529 = vpop.f32.mrb[0].mxu0
        %2530 = vmatprep.mubr.bf16.mxu0 0
        %2531 = vmatmul.mubr.bf16.gmra.mrb[0].mxu0 %v1989
        %v2532 = vpop.f32.mrb[0].mxu0
        %v2533 = vadd.f32 %v2452, %v2532
        %v2534 = vpop.f32.mrb[0].mxu0
        %v2535 = vpop.f32.mrb[0].mxu0
        %v2536 = vadd.f32 %v2455, %v2535
        %v2537 = vpop.f32.mrb[0].mxu0
        %2538 = vmatprep.mubr.bf16.mxu0 0
        %2539 = vmatmul.mubr.bf16.gmra.mrb[0].mxu0 %v1990
        %v2540 = vpop.f32.mrb[0].mxu0
        %v2541 = vadd.f32 %v2460, %v2540
        %v2542 = vpop.f32.mrb[0].mxu0
        %v2543 = vpop.f32.mrb[0].mxu0
        %v2544 = vadd.f32 %v2463, %v2543
        %v2545 = vpop.f32.mrb[0].mxu0
        %2546 = vmatprep.mubr.bf16.mxu0 0
        %2547 = vmatmul.mubr.bf16.gmra.mrb[0].mxu0 %v1991
        %v2548 = vpop.f32.mrb[0].mxu0
        %v2549 = vadd.f32 %v2468, %v2548
        %v2550 = vpop.f32.mrb[0].mxu0
        %v2551 = vpop.f32.mrb[0].mxu0
        %v2552 = vadd.f32 %v2471, %v2551
        %v2553 = vpop.f32.mrb[0].mxu0
        %2554 = vmatprep.mubr.bf16.mxu0 0
        %2555 = vmatmul.mubr.bf16.gmra.mrb[0].mxu0 %v1992
        %v2556 = vpop.f32.mrb[0].mxu0
        %v2557 = vadd.f32 %v2476, %v2556
        %v2558 = vpop.f32.mrb[0].mxu0
        %v2559 = vpop.f32.mrb[0].mxu0
        %v2560 = vadd.f32 %v2479, %v2559
        %v2561 = vpop.f32.mrb[0].mxu0
        %2562 = vdwg.mxu0
        %v2563 = vld [vmem:[%s7] sm:$0x1]
        %v2564 = vld [vmem:[%s8] sm:$0x1]
        %2565 = vadd.xlane.f32.xlu0 %v2517
        %v2566 = vpop.xlane.xlu0 %2565
        %2567 = vadd.xlane.f32.xlu0 %v2520
        %v2568 = vpop.xlane.xlu0 %2567
        %2569 = vadd.xlane.f32.xlu0 %v2525
        %v2570 = vpop.xlane.xlu0 %2569
        %2571 = vadd.xlane.f32.xlu0 %v2528
        %v2572 = vpop.xlane.xlu0 %2571
        %2573 = vadd.xlane.f32.xlu0 %v2533
        %v2574 = vpop.xlane.xlu0 %2573
        %2575 = vadd.xlane.f32.xlu0 %v2536
        %v2576 = vpop.xlane.xlu0 %2575
        %2577 = vadd.xlane.f32.xlu0 %v2541
        %v2578 = vpop.xlane.xlu0 %2577
        %2579 = vadd.xlane.f32.xlu0 %v2544
        %v2580 = vpop.xlane.xlu0 %2579
        %2581 = vadd.xlane.f32.xlu0 %v2549
        %v2582 = vpop.xlane.xlu0 %2581
        %2583 = vadd.xlane.f32.xlu0 %v2552
        %v2584 = vpop.xlane.xlu0 %2583
        %2585 = vadd.xlane.f32.xlu0 %v2557
        %v2586 = vpop.xlane.xlu0 %2585
        %2587 = vadd.xlane.f32.xlu0 %v2560
        %v2588 = vpop.xlane.xlu0 %2587
        %v2589 = vmul.f32 %v2566, %v1662
        %v2590 = vmul.f32 %v2568, %v1662
        %v2591 = vmul.f32 %v2570, %v1662
        %v2592 = vmul.f32 %v2572, %v1662
        %v2593 = vmul.f32 %v2574, %v1662
        %v2594 = vmul.f32 %v2576, %v1662
        %v2595 = vmul.f32 %v2578, %v1662
        %v2596 = vmul.f32 %v2580, %v1662
        %v2597 = vmul.f32 %v2582, %v1662
        %v2598 = vmul.f32 %v2584, %v1662
        %v2599 = vmul.f32 %v2586, %v1662
        %v2600 = vmul.f32 %v2588, %v1662
        %v2601 = vsub.f32 %v2517, %v2589
        %v2602 = vsub.f32 %v2520, %v2590
        %v2603 = vsub.f32 %v2525, %v2591
        %v2604 = vsub.f32 %v2528, %v2592
        %v2605 = vsub.f32 %v2533, %v2593
        %v2606 = vsub.f32 %v2536, %v2594
        %v2607 = vsub.f32 %v2541, %v2595
        %v2608 = vsub.f32 %v2544, %v2596
        %v2609 = vsub.f32 %v2549, %v2597
        %v2610 = vsub.f32 %v2552, %v2598
        %v2611 = vsub.f32 %v2557, %v2599
        %v2612 = vsub.f32 %v2560, %v2600
        %v2613 = vmul.f32 %v2601, %v2601
        %v2614 = vmul.f32 %v2602, %v2602
        %v2615 = vmul.f32 %v2603, %v2603
        %v2616 = vmul.f32 %v2604, %v2604
        %v2617 = vmul.f32 %v2605, %v2605
        %v2618 = vmul.f32 %v2606, %v2606
        %v2619 = vmul.f32 %v2607, %v2607
        %v2620 = vmul.f32 %v2608, %v2608
        %v2621 = vmul.f32 %v2609, %v2609
        %v2622 = vmul.f32 %v2610, %v2610
        %v2623 = vmul.f32 %v2611, %v2611
        %v2624 = vmul.f32 %v2612, %v2612
        %2625 = vadd.xlane.f32.xlu0 %v2613
        %v2626 = vpop.xlane.xlu0 %2625
        %2627 = vadd.xlane.f32.xlu0 %v2614
        %v2628 = vpop.xlane.xlu0 %2627
        %2629 = vadd.xlane.f32.xlu0 %v2615
        %v2630 = vpop.xlane.xlu0 %2629
        %2631 = vadd.xlane.f32.xlu0 %v2616
        %v2632 = vpop.xlane.xlu0 %2631
        %2633 = vadd.xlane.f32.xlu0 %v2617
        %v2634 = vpop.xlane.xlu0 %2633
        %2635 = vadd.xlane.f32.xlu0 %v2618
        %v2636 = vpop.xlane.xlu0 %2635
        %2637 = vadd.xlane.f32.xlu0 %v2619
        %v2638 = vpop.xlane.xlu0 %2637
        %2639 = vadd.xlane.f32.xlu0 %v2620
        %v2640 = vpop.xlane.xlu0 %2639
        %2641 = vadd.xlane.f32.xlu0 %v2621
        %v2642 = vpop.xlane.xlu0 %2641
        %2643 = vadd.xlane.f32.xlu0 %v2622
        %v2644 = vpop.xlane.xlu0 %2643
        %2645 = vadd.xlane.f32.xlu0 %v2623
        %v2646 = vpop.xlane.xlu0 %2645
        %2647 = vadd.xlane.f32.xlu0 %v2624
        %v2648 = vpop.xlane.xlu0 %2647
        %v2649 = vmul.f32 %v2626, %v1662
        %v2650 = vmul.f32 %v2628, %v1662
        %v2651 = vmul.f32 %v2630, %v1662
        %v2652 = vmul.f32 %v2632, %v1662
        %v2653 = vmul.f32 %v2634, %v1662
        %v2654 = vmul.f32 %v2636, %v1662
        %v2655 = vmul.f32 %v2638, %v1662
        %v2656 = vmul.f32 %v2640, %v1662
        %v2657 = vmul.f32 %v2642, %v1662
        %v2658 = vmul.f32 %v2644, %v1662
        %v2659 = vmul.f32 %v2646, %v1662
        %v2660 = vmul.f32 %v2648, %v1662
        %v2661 = vadd.f32 %v2649, 1e-05
        %v2662 = vadd.f32 %v2650, 1e-05
        %v2663 = vadd.f32 %v2651, 1e-05
        %v2664 = vadd.f32 %v2652, 1e-05
        %v2665 = vadd.f32 %v2653, 1e-05
        %v2666 = vadd.f32 %v2654, 1e-05
        %v2667 = vadd.f32 %v2655, 1e-05
        %v2668 = vadd.f32 %v2656, 1e-05
        %v2669 = vadd.f32 %v2657, 1e-05
        %v2670 = vadd.f32 %v2658, 1e-05
        %v2671 = vadd.f32 %v2659, 1e-05
        %v2672 = vadd.f32 %v2660, 1e-05
        %v2673 = vrsqrt.pop %v2661
        %v2674 = vrsqrt.pop %v2662
        %v2675 = vrsqrt.pop %v2663
        %v2676 = vrsqrt.pop %v2664
        %v2677 = vrsqrt.pop %v2665
        %v2678 = vrsqrt.pop %v2666
        %v2679 = vrsqrt.pop %v2667
        %v2680 = vrsqrt.pop %v2668
        %v2681 = vrsqrt.pop %v2669
        %v2682 = vrsqrt.pop %v2670
        %v2683 = vrsqrt.pop %v2671
        %v2684 = vrsqrt.pop %v2672
        %v2685 = vmul.f32 %v2601, %v2673
        %v2686 = vmul.f32 %v2602, %v2674
        %v2687 = vmul.f32 %v2603, %v2675
        %v2688 = vmul.f32 %v2604, %v2676
        %v2689 = vmul.f32 %v2605, %v2677
        %v2690 = vmul.f32 %v2606, %v2678
        %v2691 = vmul.f32 %v2607, %v2679
        %v2692 = vmul.f32 %v2608, %v2680
        %v2693 = vmul.f32 %v2609, %v2681
        %v2694 = vmul.f32 %v2610, %v2682
        %v2695 = vmul.f32 %v2611, %v2683
        %v2696 = vmul.f32 %v2612, %v2684
        %v2698 = vlaneseq
        %v2699 = vshrl.u32 %v2698, 7
        %v2700 = vsub.s32 0, %v2699
        %v2701 = vrot.slane %v2563, %v2700
        %v2703 = vmul.f32 %v2685, %v2701
        %v2704 = vmul.f32 %v2686, %v2701
        %v2705 = vmul.f32 %v2687, %v2701
        %v2706 = vmul.f32 %v2688, %v2701
        %v2707 = vmul.f32 %v2689, %v2701
        %v2708 = vmul.f32 %v2690, %v2701
        %v2709 = vmul.f32 %v2691, %v2701
        %v2710 = vmul.f32 %v2692, %v2701
        %v2711 = vmul.f32 %v2693, %v2701
        %v2712 = vmul.f32 %v2694, %v2701
        %v2713 = vmul.f32 %v2695, %v2701
        %v2714 = vmul.f32 %v2696, %v2701
        %v2716 = vlaneseq
        %v2717 = vshrl.u32 %v2716, 7
        %v2718 = vsub.s32 0, %v2717
        %v2719 = vrot.slane %v2564, %v2718
        %v2721 = vadd.f32 %v2703, %v2719
        %v2722 = vadd.f32 %v2704, %v2719
        %v2723 = vadd.f32 %v2705, %v2719
        %v2724 = vadd.f32 %v2706, %v2719
        %v2725 = vadd.f32 %v2707, %v2719
        %v2726 = vadd.f32 %v2708, %v2719
        %v2727 = vadd.f32 %v2709, %v2719
        %v2728 = vadd.f32 %v2710, %v2719
        %v2729 = vadd.f32 %v2711, %v2719
        %v2730 = vadd.f32 %v2712, %v2719
        %v2731 = vadd.f32 %v2713, %v2719
        %v2732 = vadd.f32 %v2714, %v2719
        %v2733 = vadd.f32 %v2721, %v1580
        %v2734 = vadd.f32 %v2722, %v1584
        %v2735 = vadd.f32 %v2723, %v1590
        %v2736 = vadd.f32 %v2724, %v1594
        %v2737 = vadd.f32 %v2725, %v1600
        %v2738 = vadd.f32 %v2726, %v1604
        %v2739 = vadd.f32 %v2727, %v1610
        %v2740 = vadd.f32 %v2728, %v1614
        %v2741 = vadd.f32 %v2729, %v1620
        %v2742 = vadd.f32 %v2730, %v1624
        %v2743 = vadd.f32 %v2731, %v1630
        %v2744 = vadd.f32 %v2732, %v1634
        %v2745 = vmax.f32 %v2733, 0.0
        %v2746 = vmax.f32 %v2734, 0.0
        %v2747 = vmax.f32 %v2735, 0.0
        %v2748 = vmax.f32 %v2736, 0.0
        %v2749 = vmax.f32 %v2737, 0.0
        %v2750 = vmax.f32 %v2738, 0.0
        %v2751 = vmax.f32 %v2739, 0.0
        %v2752 = vmax.f32 %v2740, 0.0
        %v2753 = vmax.f32 %v2741, 0.0
        %v2754 = vmax.f32 %v2742, 0.0
        %v2755 = vmax.f32 %v2743, 0.0
        %v2756 = vmax.f32 %v2744, 0.0
        %2757 = vst [vmem:[%s325] sm:$0xff] %v2745
        %2758 = vst [vmem:[%s325 + $0x8] sm:$0xff] %v2746
        %2759 = vst [vmem:[%s325 + $0x10] sm:$0xff] %v2747
        %2760 = vst [vmem:[%s325 + $0x18] sm:$0xff] %v2748
        %2761 = vst [vmem:[%s325 + $0x20] sm:$0xff] %v2749
        %2762 = vst [vmem:[%s325 + $0x28] sm:$0xff] %v2750
        %2763 = vst [vmem:[%s325 + $0x30] sm:$0xff] %v2751
        %2764 = vst [vmem:[%s325 + $0x38] sm:$0xff] %v2752
        %2765 = vst [vmem:[%s325 + $0x40] sm:$0xff] %v2753
        %2766 = vst [vmem:[%s325 + $0x48] sm:$0xff] %v2754
        %2767 = vst [vmem:[%s325 + $0x50] sm:$0xff] %v2755
        %2768 = vst [vmem:[%s325 + $0x58] sm:$0xff] %v2756
        %s2769 = sand.u32 %s225, 1
        %s2770 = scalar_lea.sflag [#allocation3], %s2769
        %s2771 = sand.u32 %s225, 1
        %s2772 = smul.addr %s2771, 96
        %s2773 = scalar_lea.vmem [#allocation2], %s2772
        // Predicated region
        $region57: #{residual_block.1} parent=55 // pred_check
          %p2774 = pneg %p235
        $region58: #{residual_block.1} parent=55 // pred_check_branch
          %2776 = sbr.rel (%p2774) target = $region60
        $region59: #{residual_block.1} parent=55 // pred_region
          %s2778 = ssub.s32 1536, 1536
          %2779 = vsyncadd %s2770, %s2778
          %s2780 = smul.addr %s23, 12
          %s2781 = smul.addr %s2780, 128
          %s2782 = scalar_lea.hbm %s9, %s2781
          %s2783 = sshll.u32 %s2773, 4
          %s2784 = int_to_ptr.vmem [resolvable:$true] %s2783
          %2789 = dma.vmem_to_hbm [thread:$0]  %s2784, 1536, %s2782, %s2770, 128, 128, 8
        $region60: #{residual_block.1} parent=55 // pred_fallthru
          _
      $region56: #{residual_block.1} parent=5 // pred_fallthru
        _
      %p2790 = scmp.le.s32.totalorder 2, %s18
      // Predicated region
      $region61: #{residual_block.1} parent=5 // pred_check
        %p2791 = pneg %p2790
      $region62: #{residual_block.1} parent=5 // pred_check_branch
        %2793 = sbr.rel (%p2791) target = $region64
      $region63: #{residual_block.1} parent=5 // pred_region
        %s2794 = ssub.s32 %s18, 2
        // Predicated region
        $region65: #{residual_block.1} parent=63 // pred_check
          %p2795 = pneg %p241
        $region66: #{residual_block.1} parent=63 // pred_check_branch
          %2797 = sbr.rel (%p2795) target = $region68
        $region67: #{residual_block.1} parent=63 // pred_region
          %s2798 = sand.u32 %s226, 1
          %s2799 = scalar_lea.sflag [#allocation3], %s2798
          %s2800 = sand.u32 %s226, 1
          %s2801 = smul.addr %s2800, 96
          %s2802 = scalar_lea.vmem [#allocation2], %s2801
          %2803 = dma.done %s2799, 1536
        $region68: #{residual_block.1} parent=63 // pred_fallthru
          _
      $region64: #{residual_block.1} parent=5 // pred_fallthru
        _
    $region6: #{residual_block.1} parent=1 // loop_footer
      %s22 = sadd.s32 1, %s18
    $region7: #{residual_block.1} parent=1 // loop_footer_branch
      %17 = sbr.rel target = $region3
    $region8: #{residual_block.1} parent=1 // loop_exit
      _
    %2804 = vsyncpa [#allocation3], 1
    %s2805 = scalar_lea.sflag [#allocation3], 1
    %2806 = vsyncpa %s2805, 1

</llo_original>
